<compile_context>
chip_gen: v5e
topology: v5e:2x2
jax: 0.10.0
libtpu: 0.0.40
codegen_flags: <defaults>
</compile_context>

<pallas_src>
import jax
import jax.numpy as jnp
from jax.experimental import pallas as pl
from jax.experimental.pallas import tpu as pltpu


def _round_up(x, m):
    return (x + m - 1) // m * m


def _prep_geo(rois):
    """rois [N,4|5] -> per-box (xc, yc, log w, log h), shape [N,4], f32."""
    rois = rois.astype(jnp.float32)
    if rois.shape[1] == 5:
        rois = rois[:, 1:]
    x0, y0, x1, y1 = rois[:, 0], rois[:, 1], rois[:, 2], rois[:, 3]
    w = x1 - x0 + 1e-10
    h = y1 - y0 + 1e-10
    xc = (x1 + x0) * 0.5
    yc = (y1 + y0) * 0.5
    return jnp.stack([xc, yc, jnp.log(w), jnp.log(h)], axis=1)


def _make_kernel(K, inv_enc):
    """K = dim_mm // 8; inv_enc[k] = 100 / wave_length**(8k/dim_mm) (static floats)."""

    def kernel(kgeo_ref, qgeoT_ref, ktab_ref, qtab_ref,
               wamp_ref, wph_ref, bias_ref, out_ref):
        # Per-key columns [TN, 1]
        xk = kgeo_ref[:, 0:1]
        yk = kgeo_ref[:, 1:2]
        lwk = kgeo_ref[:, 2:3]
        lhk = kgeo_ref[:, 3:4]
        # Per-query rows [1, TM]
        xq = qgeoT_ref[0:1, :]
        yq = qgeoT_ref[1:2, :]

        # Non-separable features: |xk-xq|/wk and |yk-yq|/hk, in log space.
        # Exact-zero mask matches PyTorch (the ratio is 0 iff the numerator is 0).
        dx = jnp.abs(xk - xq)
        dy = jnp.abs(yk - yq)
        base0 = jnp.where(dx == 0.0, 0.0, jnp.log(dx) - lwk)
        base1 = jnp.where(dy == 0.0, 0.0, jnp.log(dy) - lhk)

        acc = jnp.zeros(out_ref.shape, jnp.float32)

        # One fused sine per (feature, k) for the two non-separable features.
        for k in range(K):
            c = inv_enc[k]
            acc = acc + wamp_ref[0, k] * jnp.sin(base0 * c + wph_ref[0, k])
            acc = acc + wamp_ref[1, k] * jnp.sin(base1 * c + wph_ref[1, k])

        # Separable features (wk/wq, hk/hq): rank-4K outer product via VPU
        # broadcast FMAs (no full-tile transcendentals at all for these).
        for j in range(4 * K):
            acc = acc + ktab_ref[:, j:j + 1] * qtab_ref[j:j + 1, :]

        out_ref[...] = jnp.maximum(acc + bias_ref[0], 0.0)

    return kernel


def geometry_transform_v2(rois_keys, rois_queries, weight, bias, dim_mm,
                          wave_length=1000.0, block_keys=256, block_queries=512):
    """Forward of Geometry_Transform_v2.  weight: [1, dim_mm], bias: [1]."""
    if rois_queries is None:
        rois_queries = rois_keys
    assert dim_mm % 8 == 0
    K = dim_mm // 8
    inv_enc = [100.0 / (float(wave_length) ** (8.0 * k / dim_mm)) for k in range(K)]
    ck = jnp.asarray(inv_enc, jnp.float32)                     # [K]

    kgeo = _prep_geo(rois_keys)                                # [N, 4]
    qgeo = _prep_geo(rois_queries)                             # [M, 4]
    N, M = kgeo.shape[0], qgeo.shape[0]

    # PyTorch flattening order: weight[f*2K : f*2K+K] -> sin, [+K : 2K] -> cos.
    wr = weight.reshape(4, 2 * K).astype(jnp.float32)
    wsin, wcos = wr[:, :K], wr[:, K:]
    wamp = jnp.sqrt(wsin * wsin + wcos * wcos)                 # [4, K]
    wph = jnp.arctan2(wcos, wsin)                              # [4, K]

    # Rank-4K key/query trig tables for the separable w/h-ratio features
    # (angle-addition expansion; amplitudes folded into the key side).
    lwk, lhk = kgeo[:, 2:3], kgeo[:, 3:4]                      # [N, 1]
    lwq, lhq = qgeo[:, 2:3], qgeo[:, 3:4]                      # [M, 1]
    aw = lwk * ck[None, :] + wph[2][None, :]                   # [N, K]
    ah = lhk * ck[None, :] + wph[3][None, :]
    ktab = jnp.concatenate(
        [wamp[2] * jnp.sin(aw), -wamp[2] * jnp.cos(aw),
         wamp[3] * jnp.sin(ah), -wamp[3] * jnp.cos(ah)], axis=1)          # [N, 4K]
    bw = lwq * ck[None, :]                                     # [M, K]
    bh = lhq * ck[None, :]
    qtab = jnp.concatenate(
        [jnp.cos(bw), jnp.sin(bw), jnp.cos(bh), jnp.sin(bh)], axis=1).T   # [4K, M]

    qgeoT = qgeo.T                                             # [4, M]

    # Tiling: sublane-multiple key tiles, lane-dense (multiple-of-128) query tiles.
    TN = min(block_keys, _round_up(N, 8))
    TM = min(block_queries, _round_up(M, 128))
    N_pad = _round_up(N, TN)
    M_pad = _round_up(M, TM)

    kgeo_p = jnp.zeros((N_pad, 4), jnp.float32).at[:N].set(kgeo)
    ktab_p = jnp.zeros((N_pad, 4 * K), jnp.float32).at[:N].set(ktab)
    qgeoT_p = jnp.zeros((4, M_pad), jnp.float32).at[:, :M].set(qgeoT)
    qtab_p = jnp.zeros((4 * K, M_pad), jnp.float32).at[:, :M].set(qtab)

    kernel = _make_kernel(K, inv_enc)
    out = pl.pallas_call(
        kernel,
        out_shape=jax.ShapeDtypeStruct((N_pad, M_pad), jnp.float32),
        grid=(N_pad // TN, M_pad // TM),
        in_specs=[
            pl.BlockSpec((TN, 4), lambda i, j: (i, 0)),          # key geometry
            pl.BlockSpec((4, TM), lambda i, j: (0, j)),          # query geometry
            pl.BlockSpec((TN, 4 * K), lambda i, j: (i, 0)),      # key trig table
            pl.BlockSpec((4 * K, TM), lambda i, j: (0, j)),      # query trig table
            pl.BlockSpec((2, K), lambda i, j: (0, 0),
                         memory_space=pltpu.MemorySpace.SMEM),   # wamp (feats 0,1)
            pl.BlockSpec((2, K), lambda i, j: (0, 0),
                         memory_space=pltpu.MemorySpace.SMEM),   # wphase (feats 0,1)
            pl.BlockSpec((1,), lambda i, j: (0,),
                         memory_space=pltpu.MemorySpace.SMEM),   # bias
        ],
        out_specs=pl.BlockSpec((TN, TM), lambda i, j: (i, j)),
        compiler_params=pltpu.CompilerParams(
            dimension_semantics=("parallel", "parallel"),
            vmem_limit_bytes=32 * 1024 * 1024),
    )(kgeo_p, qgeoT_p, ktab_p, qtab_p,
      wamp[:2], wph[:2], bias.astype(jnp.float32))
    return out[:N, :M]


def _reference(rois_keys, rois_queries, weight, bias, dim_mm, wave_length=1000.0):
    """Pure-JAX mirror of the PyTorch forward (division + log + zero mask)."""
    if rois_queries is None:
        rois_queries = rois_keys
    rk = rois_keys.astype(jnp.float32)
    rq = rois_queries.astype(jnp.float32)
    if rk.shape[1] == 5:
        rk = rk[:, 1:]
    if rq.shape[1] == 5:
        rq = rq[:, 1:]
    wk = (rk[:, 2] - rk[:, 0] + 1e-10)[:, None]
    hk = (rk[:, 3] - rk[:, 1] + 1e-10)[:, None]
    xk = ((rk[:, 2] + rk[:, 0]) * 0.5)[:, None]
    yk = ((rk[:, 3] + rk[:, 1]) * 0.5)[:, None]
    wq = (rq[:, 2] - rq[:, 0] + 1e-10)[None, :]
    hq = (rq[:, 3] - rq[:, 1] + 1e-10)[None, :]
    xq = ((rq[:, 2] + rq[:, 0]) * 0.5)[None, :]
    yq = ((rq[:, 3] + rq[:, 1]) * 0.5)[None, :]
    feat = jnp.stack([jnp.abs(xk - xq) / wk, jnp.abs(yk - yq) / hk,
                      wk / wq, hk / hq], axis=2)
    logf = jnp.where(feat == 0, 0.0, jnp.log(feat))
    K = dim_mm // 8
    enc = jnp.asarray([wave_length ** (8.0 * i / dim_mm) for i in range(K)],
                      jnp.float32)
    pe = logf[..., None] * 100.0 / enc
    pe = jnp.concatenate([jnp.sin(pe), jnp.cos(pe)], axis=3)
    pe = pe.reshape(pe.shape[0], pe.shape[1], -1)
    # Elementwise multiply + reduce (not an MXU dot) so the reference is exact f32.
    out = jnp.sum(pe * weight.reshape(-1).astype(jnp.float32), axis=-1) + bias[0]
    return jnp.maximum(out, 0.0)


def _run_case(key, n_keys, n_queries, dim_mm, with_batch_col):
    k1, k2, k3, k4, k5, k6 = jax.random.split(key, 6)

    def make_rois(ka, kb, n):
        xy0 = jax.random.uniform(ka, (n, 2), minval=0.0, maxval=32.0)
        wh = jax.random.uniform(kb, (n, 2), minval=1.0, maxval=16.0)
        r = jnp.concatenate([xy0, xy0 + wh], axis=1).astype(jnp.float32)
        if with_batch_col:
            r = jnp.concatenate([jnp.zeros((n, 1), jnp.float32), r], axis=1)
        return r

    rois_k = make_rois(k1, k2, n_keys)
    rois_q = None if n_queries is None else make_rois(k3, k4, n_queries)

    bound = 1.0 / (dim_mm ** 0.5)
    weight = jax.random.uniform(k5, (1, dim_mm), minval=-bound,
                                maxval=bound).astype(jnp.float32)
    bias = jax.random.uniform(k6, (1,), minval=-bound,
                              maxval=bound).astype(jnp.float32)

    out = geometry_transform_v2(rois_k, rois_q, weight, bias, dim_mm)
    out = jax.block_until_ready(out)
    ref = _reference(rois_k, rois_q, weight, bias, dim_mm)

    m = n_keys if n_queries is None else n_queries
    assert out.shape == (n_keys, m), out.shape
    # Log-space + angle-addition rewrites differ from the reference only in
    # low-order f32 bits amplified by the x100 phase scale (~1e-4 worst case).
    err = float(jnp.max(jnp.abs(out - ref)))
    assert jnp.allclose(out, ref, atol=5e-4, rtol=5e-4), err


if __name__ == "__main__":
    key = jax.random.PRNGKey(0)
    k_a, k_b = jax.random.split(key)

    # Case 1: keys == queries (forward(rois)), small square problem.
    _run_case(k_a, n_keys=8, n_queries=None, dim_mm=32, with_batch_col=False)

    # Case 2: distinct queries, ragged sizes (exercises padding), 5-col ROIs.
    _run_case(k_b, n_keys=13, n_queries=10, dim_mm=16, with_batch_col=True)

    print("KERNEL_OK")
</pallas_src>

<mosaic_0001>
module attributes {stable_mosaic.version = 11 : i64} {
  func.func @kernel(%arg0: i32, %arg1: i32, %arg2: memref<8x4xf32, #tpu.memory_space<vmem>>, %arg3: memref<4x128xf32, #tpu.memory_space<vmem>>, %arg4: memref<8x16xf32, #tpu.memory_space<vmem>>, %arg5: memref<16x128xf32, #tpu.memory_space<vmem>>, %arg6: memref<2x4xf32, #tpu.memory_space<smem>>, %arg7: memref<2x4xf32, #tpu.memory_space<smem>>, %arg8: memref<1xf32, #tpu.memory_space<smem>>, %arg9: memref<8x128xf32, #tpu.memory_space<vmem>>) attributes {dimension_semantics = [#tpu.dimension_semantics<parallel>, #tpu.dimension_semantics<parallel>], iteration_bounds = array<i64: 1, 1>, scalar_prefetch = 0 : i64, scratch_operands = 0 : i64, tpu.core_type = #tpu.core_type<tc>, window_params = [{transform_indices = @transform_0, window_bounds = array<i64: 8, 4>}, {transform_indices = @transform_1, window_bounds = array<i64: 4, 128>}, {transform_indices = @transform_2, window_bounds = array<i64: 8, 16>}, {transform_indices = @transform_3, window_bounds = array<i64: 16, 128>}, {transform_indices = @transform_4, window_bounds = array<i64: 2, 4>}, {transform_indices = @transform_5, window_bounds = array<i64: 2, 4>}, {transform_indices = @transform_6, window_bounds = array<i64: 1>}, {transform_indices = @transform_7, window_bounds = array<i64: 8, 128>}]} {
    %c0 = arith.constant 0 : index
    %c0_0 = arith.constant 0 : index
    %0 = vector.load %arg2[%c0, %c0_0] : memref<8x4xf32, #tpu.memory_space<vmem>>, vector<8x1xf32>
    %c0_1 = arith.constant 0 : index
    %c1 = arith.constant 1 : index
    %1 = vector.load %arg2[%c0_1, %c1] : memref<8x4xf32, #tpu.memory_space<vmem>>, vector<8x1xf32>
    %c0_2 = arith.constant 0 : index
    %c2 = arith.constant 2 : index
    %2 = vector.load %arg2[%c0_2, %c2] : memref<8x4xf32, #tpu.memory_space<vmem>>, vector<8x1xf32>
    %c0_3 = arith.constant 0 : index
    %c3 = arith.constant 3 : index
    %3 = vector.load %arg2[%c0_3, %c3] : memref<8x4xf32, #tpu.memory_space<vmem>>, vector<8x1xf32>
    %c0_4 = arith.constant 0 : index
    %c0_5 = arith.constant 0 : index
    %4 = vector.load %arg3[%c0_4, %c0_5] : memref<4x128xf32, #tpu.memory_space<vmem>>, vector<1x128xf32>
    %c1_6 = arith.constant 1 : index
    %c0_7 = arith.constant 0 : index
    %5 = vector.load %arg3[%c1_6, %c0_7] : memref<4x128xf32, #tpu.memory_space<vmem>>, vector<1x128xf32>
    %6 = vector.broadcast %0 : vector<8x1xf32> to vector<8x128xf32>
    %7 = vector.broadcast %4 : vector<1x128xf32> to vector<8x128xf32>
    %8 = arith.subf %6, %7 : vector<8x128xf32>
    %9 = math.absf %8 : vector<8x128xf32>
    %10 = vector.broadcast %1 : vector<8x1xf32> to vector<8x128xf32>
    %11 = vector.broadcast %5 : vector<1x128xf32> to vector<8x128xf32>
    %12 = arith.subf %10, %11 : vector<8x128xf32>
    %13 = math.absf %12 : vector<8x128xf32>
    %cst = arith.constant 0.000000e+00 : f32
    %14 = vector.broadcast %cst : f32 to vector<8x128xf32>
    %15 = arith.cmpf oeq, %9, %14 : vector<8x128xf32>
    %16 = math.log %9 : vector<8x128xf32>
    %17 = vector.broadcast %2 : vector<8x1xf32> to vector<8x128xf32>
    %18 = arith.subf %16, %17 : vector<8x128xf32>
    %cst_8 = arith.constant 0.000000e+00 : f32
    %19 = vector.broadcast %cst_8 : f32 to vector<8x128xf32>
    %20 = arith.select %15, %19, %18 : vector<8x128xi1>, vector<8x128xf32>
    %cst_9 = arith.constant 0.000000e+00 : f32
    %21 = vector.broadcast %cst_9 : f32 to vector<8x128xf32>
    %22 = arith.cmpf oeq, %13, %21 : vector<8x128xf32>
    %23 = math.log %13 : vector<8x128xf32>
    %24 = vector.broadcast %3 : vector<8x1xf32> to vector<8x128xf32>
    %25 = arith.subf %23, %24 : vector<8x128xf32>
    %cst_10 = arith.constant 0.000000e+00 : f32
    %26 = vector.broadcast %cst_10 : f32 to vector<8x128xf32>
    %27 = arith.select %22, %26, %25 : vector<8x128xi1>, vector<8x128xf32>
    %cst_11 = arith.constant 0.000000e+00 : f32
    %28 = vector.broadcast %cst_11 : f32 to vector<8x128xf32>
    %c0_12 = arith.constant 0 : index
    %c0_13 = arith.constant 0 : index
    %29 = memref.load %arg6[%c0_12, %c0_13] : memref<2x4xf32, #tpu.memory_space<smem>>
    %cst_14 = arith.constant 1.000000e+02 : f32
    %30 = vector.broadcast %cst_14 : f32 to vector<8x128xf32>
    %31 = arith.mulf %20, %30 : vector<8x128xf32>
    %c0_15 = arith.constant 0 : index
    %c0_16 = arith.constant 0 : index
    %32 = memref.load %arg7[%c0_15, %c0_16] : memref<2x4xf32, #tpu.memory_space<smem>>
    %33 = vector.broadcast %32 : f32 to vector<8x128xf32>
    %34 = arith.addf %31, %33 : vector<8x128xf32>
    %35 = math.sin %34 : vector<8x128xf32>
    %36 = vector.broadcast %29 : f32 to vector<8x128xf32>
    %37 = arith.mulf %36, %35 : vector<8x128xf32>
    %38 = arith.addf %28, %37 : vector<8x128xf32>
    %c1_17 = arith.constant 1 : index
    %c0_18 = arith.constant 0 : index
    %39 = memref.load %arg6[%c1_17, %c0_18] : memref<2x4xf32, #tpu.memory_space<smem>>
    %cst_19 = arith.constant 1.000000e+02 : f32
    %40 = vector.broadcast %cst_19 : f32 to vector<8x128xf32>
    %41 = arith.mulf %27, %40 : vector<8x128xf32>
    %c1_20 = arith.constant 1 : index
    %c0_21 = arith.constant 0 : index
    %42 = memref.load %arg7[%c1_20, %c0_21] : memref<2x4xf32, #tpu.memory_space<smem>>
    %43 = vector.broadcast %42 : f32 to vector<8x128xf32>
    %44 = arith.addf %41, %43 : vector<8x128xf32>
    %45 = math.sin %44 : vector<8x128xf32>
    %46 = vector.broadcast %39 : f32 to vector<8x128xf32>
    %47 = arith.mulf %46, %45 : vector<8x128xf32>
    %48 = arith.addf %38, %47 : vector<8x128xf32>
    %c0_22 = arith.constant 0 : index
    %c1_23 = arith.constant 1 : index
    %49 = memref.load %arg6[%c0_22, %c1_23] : memref<2x4xf32, #tpu.memory_space<smem>>
    %cst_24 = arith.constant 17.782795 : f32
    %50 = vector.broadcast %cst_24 : f32 to vector<8x128xf32>
    %51 = arith.mulf %20, %50 : vector<8x128xf32>
    %c0_25 = arith.constant 0 : index
    %c1_26 = arith.constant 1 : index
    %52 = memref.load %arg7[%c0_25, %c1_26] : memref<2x4xf32, #tpu.memory_space<smem>>
    %53 = vector.broadcast %52 : f32 to vector<8x128xf32>
    %54 = arith.addf %51, %53 : vector<8x128xf32>
    %55 = math.sin %54 : vector<8x128xf32>
    %56 = vector.broadcast %49 : f32 to vector<8x128xf32>
    %57 = arith.mulf %56, %55 : vector<8x128xf32>
    %58 = arith.addf %48, %57 : vector<8x128xf32>
    %c1_27 = arith.constant 1 : index
    %c1_28 = arith.constant 1 : index
    %59 = memref.load %arg6[%c1_27, %c1_28] : memref<2x4xf32, #tpu.memory_space<smem>>
    %cst_29 = arith.constant 17.782795 : f32
    %60 = vector.broadcast %cst_29 : f32 to vector<8x128xf32>
    %61 = arith.mulf %27, %60 : vector<8x128xf32>
    %c1_30 = arith.constant 1 : index
    %c1_31 = arith.constant 1 : index
    %62 = memref.load %arg7[%c1_30, %c1_31] : memref<2x4xf32, #tpu.memory_space<smem>>
    %63 = vector.broadcast %62 : f32 to vector<8x128xf32>
    %64 = arith.addf %61, %63 : vector<8x128xf32>
    %65 = math.sin %64 : vector<8x128xf32>
    %66 = vector.broadcast %59 : f32 to vector<8x128xf32>
    %67 = arith.mulf %66, %65 : vector<8x128xf32>
    %68 = arith.addf %58, %67 : vector<8x128xf32>
    %c0_32 = arith.constant 0 : index
    %c2_33 = arith.constant 2 : index
    %69 = memref.load %arg6[%c0_32, %c2_33] : memref<2x4xf32, #tpu.memory_space<smem>>
    %cst_34 = arith.constant 3.1622777 : f32
    %70 = vector.broadcast %cst_34 : f32 to vector<8x128xf32>
    %71 = arith.mulf %20, %70 : vector<8x128xf32>
    %c0_35 = arith.constant 0 : index
    %c2_36 = arith.constant 2 : index
    %72 = memref.load %arg7[%c0_35, %c2_36] : memref<2x4xf32, #tpu.memory_space<smem>>
    %73 = vector.broadcast %72 : f32 to vector<8x128xf32>
    %74 = arith.addf %71, %73 : vector<8x128xf32>
    %75 = math.sin %74 : vector<8x128xf32>
    %76 = vector.broadcast %69 : f32 to vector<8x128xf32>
    %77 = arith.mulf %76, %75 : vector<8x128xf32>
    %78 = arith.addf %68, %77 : vector<8x128xf32>
    %c1_37 = arith.constant 1 : index
    %c2_38 = arith.constant 2 : index
    %79 = memref.load %arg6[%c1_37, %c2_38] : memref<2x4xf32, #tpu.memory_space<smem>>
    %cst_39 = arith.constant 3.1622777 : f32
    %80 = vector.broadcast %cst_39 : f32 to vector<8x128xf32>
    %81 = arith.mulf %27, %80 : vector<8x128xf32>
    %c1_40 = arith.constant 1 : index
    %c2_41 = arith.constant 2 : index
    %82 = memref.load %arg7[%c1_40, %c2_41] : memref<2x4xf32, #tpu.memory_space<smem>>
    %83 = vector.broadcast %82 : f32 to vector<8x128xf32>
    %84 = arith.addf %81, %83 : vector<8x128xf32>
    %85 = math.sin %84 : vector<8x128xf32>
    %86 = vector.broadcast %79 : f32 to vector<8x128xf32>
    %87 = arith.mulf %86, %85 : vector<8x128xf32>
    %88 = arith.addf %78, %87 : vector<8x128xf32>
    %c0_42 = arith.constant 0 : index
    %c3_43 = arith.constant 3 : index
    %89 = memref.load %arg6[%c0_42, %c3_43] : memref<2x4xf32, #tpu.memory_space<smem>>
    %cst_44 = arith.constant 0.562341332 : f32
    %90 = vector.broadcast %cst_44 : f32 to vector<8x128xf32>
    %91 = arith.mulf %20, %90 : vector<8x128xf32>
    %c0_45 = arith.constant 0 : index
    %c3_46 = arith.constant 3 : index
    %92 = memref.load %arg7[%c0_45, %c3_46] : memref<2x4xf32, #tpu.memory_space<smem>>
    %93 = vector.broadcast %92 : f32 to vector<8x128xf32>
    %94 = arith.addf %91, %93 : vector<8x128xf32>
    %95 = math.sin %94 : vector<8x128xf32>
    %96 = vector.broadcast %89 : f32 to vector<8x128xf32>
    %97 = arith.mulf %96, %95 : vector<8x128xf32>
    %98 = arith.addf %88, %97 : vector<8x128xf32>
    %c1_47 = arith.constant 1 : index
    %c3_48 = arith.constant 3 : index
    %99 = memref.load %arg6[%c1_47, %c3_48] : memref<2x4xf32, #tpu.memory_space<smem>>
    %cst_49 = arith.constant 0.562341332 : f32
    %100 = vector.broadcast %cst_49 : f32 to vector<8x128xf32>
    %101 = arith.mulf %27, %100 : vector<8x128xf32>
    %c1_50 = arith.constant 1 : index
    %c3_51 = arith.constant 3 : index
    %102 = memref.load %arg7[%c1_50, %c3_51] : memref<2x4xf32, #tpu.memory_space<smem>>
    %103 = vector.broadcast %102 : f32 to vector<8x128xf32>
    %104 = arith.addf %101, %103 : vector<8x128xf32>
    %105 = math.sin %104 : vector<8x128xf32>
    %106 = vector.broadcast %99 : f32 to vector<8x128xf32>
    %107 = arith.mulf %106, %105 : vector<8x128xf32>
    %108 = arith.addf %98, %107 : vector<8x128xf32>
    %c0_52 = arith.constant 0 : index
    %c0_53 = arith.constant 0 : index
    %109 = vector.load %arg4[%c0_52, %c0_53] : memref<8x16xf32, #tpu.memory_space<vmem>>, vector<8x1xf32>
    %c0_54 = arith.constant 0 : index
    %c0_55 = arith.constant 0 : index
    %110 = vector.load %arg5[%c0_54, %c0_55] : memref<16x128xf32, #tpu.memory_space<vmem>>, vector<1x128xf32>
    %111 = vector.broadcast %109 : vector<8x1xf32> to vector<8x128xf32>
    %112 = vector.broadcast %110 : vector<1x128xf32> to vector<8x128xf32>
    %113 = arith.mulf %111, %112 : vector<8x128xf32>
    %114 = arith.addf %108, %113 : vector<8x128xf32>
    %c0_56 = arith.constant 0 : index
    %c1_57 = arith.constant 1 : index
    %115 = vector.load %arg4[%c0_56, %c1_57] : memref<8x16xf32, #tpu.memory_space<vmem>>, vector<8x1xf32>
    %c1_58 = arith.constant 1 : index
    %c0_59 = arith.constant 0 : index
    %116 = vector.load %arg5[%c1_58, %c0_59] : memref<16x128xf32, #tpu.memory_space<vmem>>, vector<1x128xf32>
    %117 = vector.broadcast %115 : vector<8x1xf32> to vector<8x128xf32>
    %118 = vector.broadcast %116 : vector<1x128xf32> to vector<8x128xf32>
    %119 = arith.mulf %117, %118 : vector<8x128xf32>
    %120 = arith.addf %114, %119 : vector<8x128xf32>
    %c0_60 = arith.constant 0 : index
    %c2_61 = arith.constant 2 : index
    %121 = vector.load %arg4[%c0_60, %c2_61] : memref<8x16xf32, #tpu.memory_space<vmem>>, vector<8x1xf32>
    %c2_62 = arith.constant 2 : index
    %c0_63 = arith.constant 0 : index
    %122 = vector.load %arg5[%c2_62, %c0_63] : memref<16x128xf32, #tpu.memory_space<vmem>>, vector<1x128xf32>
    %123 = vector.broadcast %121 : vector<8x1xf32> to vector<8x128xf32>
    %124 = vector.broadcast %122 : vector<1x128xf32> to vector<8x128xf32>
    %125 = arith.mulf %123, %124 : vector<8x128xf32>
    %126 = arith.addf %120, %125 : vector<8x128xf32>
    %c0_64 = arith.constant 0 : index
    %c3_65 = arith.constant 3 : index
    %127 = vector.load %arg4[%c0_64, %c3_65] : memref<8x16xf32, #tpu.memory_space<vmem>>, vector<8x1xf32>
    %c3_66 = arith.constant 3 : index
    %c0_67 = arith.constant 0 : index
    %128 = vector.load %arg5[%c3_66, %c0_67] : memref<16x128xf32, #tpu.memory_space<vmem>>, vector<1x128xf32>
    %129 = vector.broadcast %127 : vector<8x1xf32> to vector<8x128xf32>
    %130 = vector.broadcast %128 : vector<1x128xf32> to vector<8x128xf32>
    %131 = arith.mulf %129, %130 : vector<8x128xf32>
    %132 = arith.addf %126, %131 : vector<8x128xf32>
    %c0_68 = arith.constant 0 : index
    %c4 = arith.constant 4 : index
    %133 = vector.load %arg4[%c0_68, %c4] : memref<8x16xf32, #tpu.memory_space<vmem>>, vector<8x1xf32>
    %c4_69 = arith.constant 4 : index
    %c0_70 = arith.constant 0 : index
    %134 = vector.load %arg5[%c4_69, %c0_70] : memref<16x128xf32, #tpu.memory_space<vmem>>, vector<1x128xf32>
    %135 = vector.broadcast %133 : vector<8x1xf32> to vector<8x128xf32>
    %136 = vector.broadcast %134 : vector<1x128xf32> to vector<8x128xf32>
    %137 = arith.mulf %135, %136 : vector<8x128xf32>
    %138 = arith.addf %132, %137 : vector<8x128xf32>
    %c0_71 = arith.constant 0 : index
    %c5 = arith.constant 5 : index
    %139 = vector.load %arg4[%c0_71, %c5] : memref<8x16xf32, #tpu.memory_space<vmem>>, vector<8x1xf32>
    %c5_72 = arith.constant 5 : index
    %c0_73 = arith.constant 0 : index
    %140 = vector.load %arg5[%c5_72, %c0_73] : memref<16x128xf32, #tpu.memory_space<vmem>>, vector<1x128xf32>
    %141 = vector.broadcast %139 : vector<8x1xf32> to vector<8x128xf32>
    %142 = vector.broadcast %140 : vector<1x128xf32> to vector<8x128xf32>
    %143 = arith.mulf %141, %142 : vector<8x128xf32>
    %144 = arith.addf %138, %143 : vector<8x128xf32>
    %c0_74 = arith.constant 0 : index
    %c6 = arith.constant 6 : index
    %145 = vector.load %arg4[%c0_74, %c6] : memref<8x16xf32, #tpu.memory_space<vmem>>, vector<8x1xf32>
    %c6_75 = arith.constant 6 : index
    %c0_76 = arith.constant 0 : index
    %146 = vector.load %arg5[%c6_75, %c0_76] : memref<16x128xf32, #tpu.memory_space<vmem>>, vector<1x128xf32>
    %147 = vector.broadcast %145 : vector<8x1xf32> to vector<8x128xf32>
    %148 = vector.broadcast %146 : vector<1x128xf32> to vector<8x128xf32>
    %149 = arith.mulf %147, %148 : vector<8x128xf32>
    %150 = arith.addf %144, %149 : vector<8x128xf32>
    %c0_77 = arith.constant 0 : index
    %c7 = arith.constant 7 : index
    %151 = vector.load %arg4[%c0_77, %c7] : memref<8x16xf32, #tpu.memory_space<vmem>>, vector<8x1xf32>
    %c7_78 = arith.constant 7 : index
    %c0_79 = arith.constant 0 : index
    %152 = vector.load %arg5[%c7_78, %c0_79] : memref<16x128xf32, #tpu.memory_space<vmem>>, vector<1x128xf32>
    %153 = vector.broadcast %151 : vector<8x1xf32> to vector<8x128xf32>
    %154 = vector.broadcast %152 : vector<1x128xf32> to vector<8x128xf32>
    %155 = arith.mulf %153, %154 : vector<8x128xf32>
    %156 = arith.addf %150, %155 : vector<8x128xf32>
    %c0_80 = arith.constant 0 : index
    %c8 = arith.constant 8 : index
    %157 = vector.load %arg4[%c0_80, %c8] : memref<8x16xf32, #tpu.memory_space<vmem>>, vector<8x1xf32>
    %c8_81 = arith.constant 8 : index
    %c0_82 = arith.constant 0 : index
    %158 = vector.load %arg5[%c8_81, %c0_82] : memref<16x128xf32, #tpu.memory_space<vmem>>, vector<1x128xf32>
    %159 = vector.broadcast %157 : vector<8x1xf32> to vector<8x128xf32>
    %160 = vector.broadcast %158 : vector<1x128xf32> to vector<8x128xf32>
    %161 = arith.mulf %159, %160 : vector<8x128xf32>
    %162 = arith.addf %156, %161 : vector<8x128xf32>
    %c0_83 = arith.constant 0 : index
    %c9 = arith.constant 9 : index
    %163 = vector.load %arg4[%c0_83, %c9] : memref<8x16xf32, #tpu.memory_space<vmem>>, vector<8x1xf32>
    %c9_84 = arith.constant 9 : index
    %c0_85 = arith.constant 0 : index
    %164 = vector.load %arg5[%c9_84, %c0_85] : memref<16x128xf32, #tpu.memory_space<vmem>>, vector<1x128xf32>
    %165 = vector.broadcast %163 : vector<8x1xf32> to vector<8x128xf32>
    %166 = vector.broadcast %164 : vector<1x128xf32> to vector<8x128xf32>
    %167 = arith.mulf %165, %166 : vector<8x128xf32>
    %168 = arith.addf %162, %167 : vector<8x128xf32>
    %c0_86 = arith.constant 0 : index
    %c10 = arith.constant 10 : index
    %169 = vector.load %arg4[%c0_86, %c10] : memref<8x16xf32, #tpu.memory_space<vmem>>, vector<8x1xf32>
    %c10_87 = arith.constant 10 : index
    %c0_88 = arith.constant 0 : index
    %170 = vector.load %arg5[%c10_87, %c0_88] : memref<16x128xf32, #tpu.memory_space<vmem>>, vector<1x128xf32>
    %171 = vector.broadcast %169 : vector<8x1xf32> to vector<8x128xf32>
    %172 = vector.broadcast %170 : vector<1x128xf32> to vector<8x128xf32>
    %173 = arith.mulf %171, %172 : vector<8x128xf32>
    %174 = arith.addf %168, %173 : vector<8x128xf32>
    %c0_89 = arith.constant 0 : index
    %c11 = arith.constant 11 : index
    %175 = vector.load %arg4[%c0_89, %c11] : memref<8x16xf32, #tpu.memory_space<vmem>>, vector<8x1xf32>
    %c11_90 = arith.constant 11 : index
    %c0_91 = arith.constant 0 : index
    %176 = vector.load %arg5[%c11_90, %c0_91] : memref<16x128xf32, #tpu.memory_space<vmem>>, vector<1x128xf32>
    %177 = vector.broadcast %175 : vector<8x1xf32> to vector<8x128xf32>
    %178 = vector.broadcast %176 : vector<1x128xf32> to vector<8x128xf32>
    %179 = arith.mulf %177, %178 : vector<8x128xf32>
    %180 = arith.addf %174, %179 : vector<8x128xf32>
    %c0_92 = arith.constant 0 : index
    %c12 = arith.constant 12 : index
    %181 = vector.load %arg4[%c0_92, %c12] : memref<8x16xf32, #tpu.memory_space<vmem>>, vector<8x1xf32>
    %c12_93 = arith.constant 12 : index
    %c0_94 = arith.constant 0 : index
    %182 = vector.load %arg5[%c12_93, %c0_94] : memref<16x128xf32, #tpu.memory_space<vmem>>, vector<1x128xf32>
    %183 = vector.broadcast %181 : vector<8x1xf32> to vector<8x128xf32>
    %184 = vector.broadcast %182 : vector<1x128xf32> to vector<8x128xf32>
    %185 = arith.mulf %183, %184 : vector<8x128xf32>
    %186 = arith.addf %180, %185 : vector<8x128xf32>
    %c0_95 = arith.constant 0 : index
    %c13 = arith.constant 13 : index
    %187 = vector.load %arg4[%c0_95, %c13] : memref<8x16xf32, #tpu.memory_space<vmem>>, vector<8x1xf32>
    %c13_96 = arith.constant 13 : index
    %c0_97 = arith.constant 0 : index
    %188 = vector.load %arg5[%c13_96, %c0_97] : memref<16x128xf32, #tpu.memory_space<vmem>>, vector<1x128xf32>
    %189 = vector.broadcast %187 : vector<8x1xf32> to vector<8x128xf32>
    %190 = vector.broadcast %188 : vector<1x128xf32> to vector<8x128xf32>
    %191 = arith.mulf %189, %190 : vector<8x128xf32>
    %192 = arith.addf %186, %191 : vector<8x128xf32>
    %c0_98 = arith.constant 0 : index
    %c14 = arith.constant 14 : index
    %193 = vector.load %arg4[%c0_98, %c14] : memref<8x16xf32, #tpu.memory_space<vmem>>, vector<8x1xf32>
    %c14_99 = arith.constant 14 : index
    %c0_100 = arith.constant 0 : index
    %194 = vector.load %arg5[%c14_99, %c0_100] : memref<16x128xf32, #tpu.memory_space<vmem>>, vector<1x128xf32>
    %195 = vector.broadcast %193 : vector<8x1xf32> to vector<8x128xf32>
    %196 = vector.broadcast %194 : vector<1x128xf32> to vector<8x128xf32>
    %197 = arith.mulf %195, %196 : vector<8x128xf32>
    %198 = arith.addf %192, %197 : vector<8x128xf32>
    %c0_101 = arith.constant 0 : index
    %c15 = arith.constant 15 : index
    %199 = vector.load %arg4[%c0_101, %c15] : memref<8x16xf32, #tpu.memory_space<vmem>>, vector<8x1xf32>
    %c15_102 = arith.constant 15 : index
    %c0_103 = arith.constant 0 : index
    %200 = vector.load %arg5[%c15_102, %c0_103] : memref<16x128xf32, #tpu.memory_space<vmem>>, vector<1x128xf32>
    %201 = vector.broadcast %199 : vector<8x1xf32> to vector<8x128xf32>
    %202 = vector.broadcast %200 : vector<1x128xf32> to vector<8x128xf32>
    %203 = arith.mulf %201, %202 : vector<8x128xf32>
    %204 = arith.addf %198, %203 : vector<8x128xf32>
    %c0_104 = arith.constant 0 : index
    %205 = memref.load %arg8[%c0_104] : memref<1xf32, #tpu.memory_space<smem>>
    %206 = vector.broadcast %205 : f32 to vector<8x128xf32>
    %207 = arith.addf %204, %206 : vector<8x128xf32>
    %cst_105 = arith.constant 0.000000e+00 : f32
    %208 = vector.broadcast %cst_105 : f32 to vector<8x128xf32>
    %209 = arith.maximumf %207, %208 : vector<8x128xf32>
    %c0_106 = arith.constant 0 : index
    %c0_107 = arith.constant 0 : index
    %210 = vector.load %arg9[%c0_106, %c0_107] : memref<8x128xf32, #tpu.memory_space<vmem>>, vector<8x128xf32>
    tpu.vector_store %arg9[%c0_106, %c0_107], %209 {strides = array<i32>} : memref<8x128xf32, #tpu.memory_space<vmem>>, vector<8x128xf32>,
    return
  }
  func.func @transform_0(%arg0: i32, %arg1: i32) -> (i32, i32) {
    %c0_i32 = arith.constant 0 : i32
    %c0_i32_0 = arith.constant 0 : i32
    return %arg0, %c0_i32 : i32, i32
  }
  func.func @transform_1(%arg0: i32, %arg1: i32) -> (i32, i32) {
    %c0_i32 = arith.constant 0 : i32
    %c0_i32_0 = arith.constant 0 : i32
    return %c0_i32, %arg1 : i32, i32
  }
  func.func @transform_2(%arg0: i32, %arg1: i32) -> (i32, i32) {
    %c0_i32 = arith.constant 0 : i32
    %c0_i32_0 = arith.constant 0 : i32
    return %arg0, %c0_i32 : i32, i32
  }
  func.func @transform_3(%arg0: i32, %arg1: i32) -> (i32, i32) {
    %c0_i32 = arith.constant 0 : i32
    %c0_i32_0 = arith.constant 0 : i32
    return %c0_i32, %arg1 : i32, i32
  }
  func.func @transform_4(%arg0: i32, %arg1: i32) -> (i32, i32) {
    %c0_i32 = arith.constant 0 : i32
    %c0_i32_0 = arith.constant 0 : i32
    %c0_i32_1 = arith.constant 0 : i32
    return %c0_i32, %c0_i32_0 : i32, i32
  }
  func.func @transform_5(%arg0: i32, %arg1: i32) -> (i32, i32) {
    %c0_i32 = arith.constant 0 : i32
    %c0_i32_0 = arith.constant 0 : i32
    %c0_i32_1 = arith.constant 0 : i32
    return %c0_i32, %c0_i32_0 : i32, i32
  }
  func.func @transform_6(%arg0: i32, %arg1: i32) -> i32 {
    %c0_i32 = arith.constant 0 : i32
    %c0_i32_0 = arith.constant 0 : i32
    return %c0_i32 : i32
  }
  func.func @transform_7(%arg0: i32, %arg1: i32) -> (i32, i32) {
    %c0_i32 = arith.constant 0 : i32
    return %arg0, %arg1 : i32, i32
  }
}

</mosaic_0001>

<llo_original>
// kernel: tpu_custom_call.1
$region0: #{tpu_custom_call.1}
  #allocation0 [shape = 'u32[]', space=smem, size = 0x4, offset = 0x4, fixed_abs, tag = 'smem constant byte address 0x4 - core index']
  #allocation1 [shape = 'u32[72,128]{1,0:T(1,128)}', space=vmem, size = 0x9000, scoped, tag = 'internal scratch']
  #allocation2 [shape = 'f32[1]{0:T(128)S(6)}', space=smem, size = 0x200, scoped, tag = 'scoped memory for tpu_custom_call.1']
  %s0 = inlined_call_operand.vmem [shape: f32[8,4], index: 0, kind: input, shape index: {}]
  %s1 = inlined_call_operand.hbm [shape: f32[4,128], index: 1, kind: input, shape index: {}]
  %s2 = inlined_call_operand.hbm [shape: f32[8,16], index: 2, kind: input, shape index: {}]
  %s3 = inlined_call_operand.vmem [shape: f32[16,128], index: 3, kind: input, shape index: {}]
  %s4 = inlined_call_operand.hbm [shape: f32[2,4], index: 4, kind: input, shape index: {}]
  %s5 = inlined_call_operand.vmem [shape: f32[2,4], index: 5, kind: input, shape index: {}]
  %s6 = inlined_call_operand.<no memory space> [shape: f32[1], index: 6, kind: input, shape index: {}]
  %s7 = inlined_call_operand.hbm [shape: f32[8,128], index: 7, kind: output, shape index: {}]
  %s8 = sld [smem:[#allocation0]]
  $region54: #{tpu_custom_call.1} parent=0
    _
  %s10 = ssub.s32 1, %s8
  %s11 = scalar_select 0, %s10, %s8
  %12 = sst [smem:[#allocation2]] %s6
  $region1: #{tpu_custom_call.1} parent=0
    #allocation3 [shape = 'u8[2048]{0}', space=vmem, size = 0x800, scoped, tag = 'input window, operand 1, single buffered']
    #allocation4 [shape = 's32[1]{0}', space=sflag, size = 0x4, scoped, tag = 'scoped memory for tpu_custom_call.1']
    #allocation5 [shape = 's32[1]{0}', space=sflag, size = 0x4, scoped, tag = 'scoped memory for tpu_custom_call.1']
    #allocation6 [shape = 's32[1]{0}', space=sflag, size = 0x4, scoped, tag = 'scoped memory for tpu_custom_call.1']
    #allocation7 [shape = 's32[1]{0}', space=sflag, size = 0x4, scoped, tag = 'scoped memory for tpu_custom_call.1']
    #allocation8 [shape = 'u8[4096]{0}', space=vmem, size = 0x1000, scoped, tag = 'input window, operand 2, single buffered']
    #allocation9 [shape = 's32[1]{0}', space=sflag, size = 0x4, scoped, tag = 'scoped memory for tpu_custom_call.1']
    #allocation10 [shape = 'u8[1024]{0}', space=smem, size = 0x400, scoped, tag = 'input window, operand 4, single buffered']
    #allocation11 [shape = 'u8[1024]{0}', space=smem, size = 0x400, scoped, tag = 'input window, operand 5, single buffered']
    #allocation12 [shape = 'u8[4096]{0}', space=vmem, size = 0x1000, scoped, tag = 'output window, operand 0, single buffered']
    %13 = vsyncpa [#allocation4], 0
    %14 = vsyncpa [#allocation9], 0
    %15 = vsyncpa [#allocation6], 0
    %16 = vsyncpa [#allocation7], 0
    %17 = vsyncpa [#allocation5], 0
    // Predicated region
    $region2: #{tpu_custom_call.1} parent=1 // pred_check
      _
    $region3: #{tpu_custom_call.1} parent=1 // pred_check_branch
      %19 = sbr.rel (0) target = $region5
    $region4: #{tpu_custom_call.1} parent=1 // pred_region
      _
    $region5: #{tpu_custom_call.1} parent=1 // pred_fallthru
      _
    // Predicated region
    $region6: #{tpu_custom_call.1} parent=1 // pred_check
      _
    $region7: #{tpu_custom_call.1} parent=1 // pred_check_branch
      %21 = sbr.rel (0) target = $region9
    $region8: #{tpu_custom_call.1} parent=1 // pred_region
      %23 = vsyncadd [#allocation4], 0
      %s25 = sshll.u32 %s1, 4
      %s26 = int_to_ptr.hbm [resolvable:$true] %s25
      %s27 = sshll.u32 [#allocation3], 4
      %s28 = int_to_ptr.vmem [resolvable:$true] %s27
      %30 = dma.hbm_to_vmem [thread:$0]  %s26, 64, %s28, [#allocation4]
    $region9: #{tpu_custom_call.1} parent=1 // pred_fallthru
      _
    // Predicated region
    $region10: #{tpu_custom_call.1} parent=1 // pred_check
      _
    $region11: #{tpu_custom_call.1} parent=1 // pred_check_branch
      %32 = sbr.rel (0) target = $region13
    $region12: #{tpu_custom_call.1} parent=1 // pred_region
      %34 = vsyncadd [#allocation9], 0
      %s36 = sshll.u32 %s2, 4
      %s37 = int_to_ptr.hbm [resolvable:$true] %s36
      %s38 = sshll.u32 [#allocation8], 4
      %s39 = int_to_ptr.vmem [resolvable:$true] %s38
      %41 = dma.hbm_to_vmem [thread:$0]  %s37, 128, %s39, [#allocation9]
    $region13: #{tpu_custom_call.1} parent=1 // pred_fallthru
      _
    // Predicated region
    $region14: #{tpu_custom_call.1} parent=1 // pred_check
      _
    $region15: #{tpu_custom_call.1} parent=1 // pred_check_branch
      %43 = sbr.rel (0) target = $region17
    $region16: #{tpu_custom_call.1} parent=1 // pred_region
      _
    $region17: #{tpu_custom_call.1} parent=1 // pred_fallthru
      _
    // Predicated region
    $region18: #{tpu_custom_call.1} parent=1 // pred_check
      _
    $region19: #{tpu_custom_call.1} parent=1 // pred_check_branch
      %45 = sbr.rel (0) target = $region21
    $region20: #{tpu_custom_call.1} parent=1 // pred_region
      %47 = vsyncadd [#allocation6], 0
      %s49 = sshll.u32 %s4, 4
      %s50 = int_to_ptr.hbm [resolvable:$true] %s49
      %52 = dma.hbm_to_smem %s50, 32, [#allocation10], [#allocation6]
    $region21: #{tpu_custom_call.1} parent=1 // pred_fallthru
      _
    // Predicated region
    $region22: #{tpu_custom_call.1} parent=1 // pred_check
      _
    $region23: #{tpu_custom_call.1} parent=1 // pred_check_branch
      %54 = sbr.rel (0) target = $region25
    $region24: #{tpu_custom_call.1} parent=1 // pred_region
      %56 = vsyncadd [#allocation7], 0
      %s58 = sshll.u32 %s5, 4
      %s59 = int_to_ptr.vmem [resolvable:$true] %s58
      %61 = dma.vmem_to_smem %s59, 32, [#allocation11], [#allocation7]
    $region25: #{tpu_custom_call.1} parent=1 // pred_fallthru
      _
    // Predicated region
    $region26: #{tpu_custom_call.1} parent=1 // pred_check
      _
    $region27: #{tpu_custom_call.1} parent=1 // pred_check_branch
      %63 = sbr.rel (0) target = $region29
    $region28: #{tpu_custom_call.1} parent=1 // pred_region
      _
    $region29: #{tpu_custom_call.1} parent=1 // pred_fallthru
      _
    // Predicated region
    $region30: #{tpu_custom_call.1} parent=1 // pred_check
      _
    $region31: #{tpu_custom_call.1} parent=1 // pred_check_branch
      %65 = sbr.rel (0) target = $region33
    $region32: #{tpu_custom_call.1} parent=1 // pred_region
      %67 = dma.done [#allocation4], 64
    $region33: #{tpu_custom_call.1} parent=1 // pred_fallthru
      _
    // Predicated region
    $region34: #{tpu_custom_call.1} parent=1 // pred_check
      _
    $region35: #{tpu_custom_call.1} parent=1 // pred_check_branch
      %69 = sbr.rel (0) target = $region37
    $region36: #{tpu_custom_call.1} parent=1 // pred_region
      %71 = dma.done [#allocation9], 128
    $region37: #{tpu_custom_call.1} parent=1 // pred_fallthru
      _
    // Predicated region
    $region38: #{tpu_custom_call.1} parent=1 // pred_check
      _
    $region39: #{tpu_custom_call.1} parent=1 // pred_check_branch
      %73 = sbr.rel (0) target = $region41
    $region40: #{tpu_custom_call.1} parent=1 // pred_region
      %75 = dma.done [#allocation6], 32
    $region41: #{tpu_custom_call.1} parent=1 // pred_fallthru
      _
    // Predicated region
    $region42: #{tpu_custom_call.1} parent=1 // pred_check
      _
    $region43: #{tpu_custom_call.1} parent=1 // pred_check_branch
      %77 = sbr.rel (0) target = $region45
    $region44: #{tpu_custom_call.1} parent=1 // pred_region
      %79 = dma.done [#allocation7], 32
    $region45: #{tpu_custom_call.1} parent=1 // pred_fallthru
      _
    %80 = sfence
    %v81 = vld [vmem:[%s0] sm:$0xff]
    %v82 = vld [vmem:[#allocation3] sm:$0x1]
    %v83 = vld [vmem:[#allocation3 + $0x1] sm:$0x1]
    %85 = vset.pattern.permute.xlu0 0
    %86 = vperm.xlu0 %85, %v81
    %v87 = vpop.permute.xlu0 %86
    %v89 = vperm.slane %v82, 0
    %v90 = vsub.f32 %v87, %v89
    %v91 = vand.u32 2147483647, %v90
    %92 = vset.pattern.permute.xlu0 1
    %93 = vperm.xlu0 %92, %v81
    %v94 = vpop.permute.xlu0 %93
    %v96 = vperm.slane %v83, 0
    %v97 = vsub.f32 %v94, %v96
    %v98 = vand.u32 2147483647, %v97
    %vm99 = vcmp.eq.f32.partialorder %v91, 0.0
    %v100 = vlog2.pop %v91
    %v101 = vmul.f32 %v100, 0.6931472
    %102 = vset.pattern.permute.xlu0 2
    %103 = vperm.xlu0 %102, %v81
    %v104 = vpop.permute.xlu0 %103
    %v106 = vsub.f32 %v101, %v104
    %v107 = vsel %vm99, 0.0, %v106
    %vm108 = vcmp.eq.f32.partialorder %v98, 0.0
    %v109 = vlog2.pop %v98
    %v110 = vmul.f32 %v109, 0.6931472
    %111 = vset.pattern.permute.xlu0 3
    %112 = vperm.xlu0 %111, %v81
    %v113 = vpop.permute.xlu0 %112
    %v115 = vsub.f32 %v110, %v113
    %v116 = vsel %vm108, 0.0, %v115
    %s117 = sld [smem:[#allocation10]]
    %v118 = vmul.f32 %v107, 100.0
    %s119 = sld [smem:[#allocation11]]
    %v120 = vstv %s119
    %v121 = vadd.f32 %v118, %v120
    %v122 = vand.u32 2147483647, %v121
    %vm123 = vcmp.le.f32.partialorder %v122, 0.7853982
    %vm124 = vcmp.lt.s32.totalorder %v121, 0
    %v125 = vand.u32 %v121, 2139095040
    %v126 = vshrl.u32 %v125, 23
    %v127 = vsub.s32 %v126, 127
    %v128 = vand.u32 2147483647, %v121
    %v129 = vand.u32 %v128, 8388607
    %v130 = vor.u32 %v129, 8388608
    %v131 = vsub.s32 0, %v130
    %v132 = vadd.s32 %v127, 1
    %vm133 = vcmp.gt.s32.totalorder %v132, 0
    %v134 = vsel %vm133, %v132, 0
    %v135 = vshrl.u32 %v134, 5
    %v136 = vand.u32 %v134, 31
    %v137 = vsub.s32 32, %v136
    %v138 = vshrl.u32 683565275, %v137
    %v139 = vshll.u32 683565275, %v136
    %v140 = vshrl.u32 2475754826, %v137
    %v141 = vor.u32 %v139, %v140
    %v142 = vshll.u32 2475754826, %v136
    %v143 = vshrl.u32 2131351028, %v137
    %v144 = vor.u32 %v142, %v143
    %v145 = vshll.u32 2131351028, %v136
    %v146 = vshrl.u32 2102212464, %v137
    %v147 = vor.u32 %v145, %v146
    %v148 = vshll.u32 2102212464, %v136
    %v149 = vshrl.u32 920167782, %v137
    %v150 = vor.u32 %v148, %v149
    %v151 = vshll.u32 920167782, %v136
    %v152 = vshrl.u32 1326507024, %v137
    %v153 = vor.u32 %v151, %v152
    %vm154 = vcmp.lt.s32.totalorder %v135, 1
    %vm155 = vcmp.lt.s32.totalorder %v135, 2
    %vm156 = vcmp.lt.s32.totalorder %v135, 3
    %vm157 = vcmp.lt.s32.totalorder %v135, 4
    %v158 = vsel %vm154, %v138, %v141
    %v159 = vsel %vm157, %v147, 2102212464
    %v160 = vsel %vm156, %v144, %v159
    %v161 = vsel %vm155, %v158, %v160
    %v162 = vsel %vm154, %v141, %v144
    %v163 = vsel %vm157, %v150, 920167782
    %v164 = vsel %vm156, %v147, %v163
    %v165 = vsel %vm155, %v162, %v164
    %v166 = vsel %vm154, %v144, %v147
    %v167 = vsel %vm157, %v153, 1326507024
    %v168 = vsel %vm156, %v150, %v167
    %v169 = vsel %vm155, %v166, %v168
    %v170 = vshll.u32 %v130, 8
    %v171 = vand.u32 %v170, 65535
    %v172 = vshrl.u32 %v170, 16
    %v173 = vand.u32 %v169, 65535
    %v174 = vshrl.u32 %v169, 16
    %v175 = vmul.u32 %v171, %v173
    %v176 = vmul.u32 %v171, %v174
    %v177 = vmul.u32 %v172, %v173
    %v178 = vmul.u32 %v172, %v174
    %v179 = vshll.u32 %v176, 16
    %v180 = vshrl.u32 %v176, 16
    %v181 = vshll.u32 %v177, 16
    %v182 = vshrl.u32 %v177, 16
    %vm183 = vc.u32 %v175, %v179
    %v184 = vsel %vm183, 1, 0
    %v185 = vadd.s32 %v175, %v179
    %v186 = vadd.s32 %v178, %v184
    %vm187 = vc.u32 %v185, %v181
    %v188 = vsel %vm187, 1, 0
    %v189 = vadd.s32 %v185, %v181
    %v190 = vadd.s32 %v186, %v188
    %v191 = vadd.s32 %v190, %v180
    %v192 = vadd.s32 %v191, %v182
    %v193 = vand.u32 %v170, 65535
    %v194 = vshrl.u32 %v170, 16
    %v195 = vand.u32 %v165, 65535
    %v196 = vshrl.u32 %v165, 16
    %v197 = vmul.u32 %v193, %v195
    %v198 = vmul.u32 %v193, %v196
    %v199 = vmul.u32 %v194, %v195
    %v200 = vmul.u32 %v194, %v196
    %v201 = vshll.u32 %v198, 16
    %v202 = vshrl.u32 %v198, 16
    %v203 = vshll.u32 %v199, 16
    %v204 = vshrl.u32 %v199, 16
    %vm205 = vc.u32 %v197, %v201
    %v206 = vsel %vm205, 1, 0
    %v207 = vadd.s32 %v197, %v201
    %v208 = vadd.s32 %v200, %v206
    %vm209 = vc.u32 %v207, %v203
    %v210 = vsel %vm209, 1, 0
    %v211 = vadd.s32 %v207, %v203
    %v212 = vadd.s32 %v208, %v210
    %v213 = vadd.s32 %v212, %v202
    %v214 = vadd.s32 %v213, %v204
    %v215 = vmul.u32 %v170, %v161
    %v216 = vadd.s32 %v192, %v211
    %vm217 = vc.u32 %v192, %v211
    %v218 = vadd.s32 %v214, 1
    %v219 = vsel %vm217, %v218, %v214
    %v220 = vadd.s32 %v215, %v219
    %v221 = vadd.s32 %v220, 536870912
    %v222 = vshrl.u32 %v221, 30
    %v223 = vshll.u32 %v222, 30
    %v224 = vsub.s32 %v220, %v223
    %vm225 = vcmp.lt.s32.totalorder %v224, 0
    %v226 = vsub.s32 0, %v224
    %v227 = vsel %vm225, %v226, %v224
    %v228 = vclz %v227
    %v229 = vsub.s32 %v228, 2
    %vm230 = vcmp.gt.s32.totalorder 0, %v229
    %v231 = vsel %vm230, 0, %v229
    %v232 = vsub.s32 32, %v231
    %v233 = vshll.u32 %v224, %v231
    %v234 = vshrl.u32 %v216, %v232
    %v235 = vor.u32 %v233, %v234
    %v236 = vsub.s32 4294967266, %v231
    %v237 = vadd.s32 %v236, 127
    %v238 = vshll.u32 %v237, 23
    %v239 = vor.u32 4788187, %v238
    %v240 = vand.u32 2147483647, %v239
    %v242 = vcvt.s32.f32 %v235
    %v243 = vmul.f32 %v242, %v240
    %v244 = vxor.u32 %v243, 2147483648
    %v245 = vsel %vm124, %v244, %v243
    %v246 = vsub.s32 4, %v222
    %v247 = vsel %vm124, %v246, %v222
    %v248 = vsel %vm123, %v121, %v245
    %v249 = vsel %vm123, 0, %v247
    %v250 = vmul.f32 %v248, %v248
    %v251 = vmul.f32 %v250, -0.001358992
    %v252 = vadd.f32 %v251, 0.041655596
    %v253 = vmul.f32 %v250, %v252
    %v254 = vadd.f32 %v253, -0.4999988
    %v255 = vmul.f32 %v250, %v254
    %v256 = vadd.f32 1.0, %v255
    %v257 = vmul.f32 %v248, %v248
    %v258 = vmul.f32 %v257, -0.00019511016
    %v259 = vadd.f32 %v258, 0.008332121
    %v260 = vmul.f32 %v257, %v259
    %v261 = vadd.f32 %v260, -0.16666654
    %v262 = vmul.f32 %v257, %v261
    %v263 = vadd.f32 %v262, 1.0
    %v264 = vmul.f32 %v263, %v248
    %vm265 = vweird.f32 %v121
    %v266 = vadd.s32 %v249, 3
    %v267 = vand.u32 %v266, 3
    %vm268 = vcmp.lt.s32.totalorder %v267, 2
    %vm269 = vcmp.eq.s32.totalorder %v267, 0
    %v270 = vxor.u32 %v264, 2147483648
    %v271 = vsel %vm269, %v256, %v270
    %vm272 = vcmp.eq.s32.totalorder %v267, 2
    %v273 = vxor.u32 %v256, 2147483648
    %v274 = vsel %vm272, %v273, %v264
    %v275 = vsel %vm268, %v271, %v274
    %v276 = vsel %vm265, nan, %v275
    %v277 = vstv %s117
    %v278 = vmul.f32 %v277, %v276
    %v279 = vadd.f32 %v278, 0.0
    %s280 = sld [smem:[#allocation10 + $0x80]]
    %v281 = vmul.f32 %v116, 100.0
    %s282 = sld [smem:[#allocation11 + $0x80]]
    %v283 = vstv %s282
    %v284 = vadd.f32 %v281, %v283
    %v285 = vand.u32 2147483647, %v284
    %vm286 = vcmp.le.f32.partialorder %v285, 0.7853982
    %vm287 = vcmp.lt.s32.totalorder %v284, 0
    %v288 = vand.u32 %v284, 2139095040
    %v289 = vshrl.u32 %v288, 23
    %v290 = vsub.s32 %v289, 127
    %v291 = vand.u32 2147483647, %v284
    %v292 = vand.u32 %v291, 8388607
    %v293 = vor.u32 %v292, 8388608
    %v294 = vsub.s32 0, %v293
    %v295 = vadd.s32 %v290, 1
    %vm296 = vcmp.gt.s32.totalorder %v295, 0
    %v297 = vsel %vm296, %v295, 0
    %v298 = vshrl.u32 %v297, 5
    %v299 = vand.u32 %v297, 31
    %v300 = vsub.s32 32, %v299
    %v301 = vshrl.u32 683565275, %v300
    %v302 = vshll.u32 683565275, %v299
    %v303 = vshrl.u32 2475754826, %v300
    %v304 = vor.u32 %v302, %v303
    %v305 = vshll.u32 2475754826, %v299
    %v306 = vshrl.u32 2131351028, %v300
    %v307 = vor.u32 %v305, %v306
    %v308 = vshll.u32 2131351028, %v299
    %v309 = vshrl.u32 2102212464, %v300
    %v310 = vor.u32 %v308, %v309
    %v311 = vshll.u32 2102212464, %v299
    %v312 = vshrl.u32 920167782, %v300
    %v313 = vor.u32 %v311, %v312
    %v314 = vshll.u32 920167782, %v299
    %v315 = vshrl.u32 1326507024, %v300
    %v316 = vor.u32 %v314, %v315
    %vm317 = vcmp.lt.s32.totalorder %v298, 1
    %vm318 = vcmp.lt.s32.totalorder %v298, 2
    %vm319 = vcmp.lt.s32.totalorder %v298, 3
    %vm320 = vcmp.lt.s32.totalorder %v298, 4
    %v321 = vsel %vm317, %v301, %v304
    %v322 = vsel %vm320, %v310, 2102212464
    %v323 = vsel %vm319, %v307, %v322
    %v324 = vsel %vm318, %v321, %v323
    %v325 = vsel %vm317, %v304, %v307
    %v326 = vsel %vm320, %v313, 920167782
    %v327 = vsel %vm319, %v310, %v326
    %v328 = vsel %vm318, %v325, %v327
    %v329 = vsel %vm317, %v307, %v310
    %v330 = vsel %vm320, %v316, 1326507024
    %v331 = vsel %vm319, %v313, %v330
    %v332 = vsel %vm318, %v329, %v331
    %v333 = vshll.u32 %v293, 8
    %v334 = vand.u32 %v333, 65535
    %v335 = vshrl.u32 %v333, 16
    %v336 = vand.u32 %v332, 65535
    %v337 = vshrl.u32 %v332, 16
    %v338 = vmul.u32 %v334, %v336
    %v339 = vmul.u32 %v334, %v337
    %v340 = vmul.u32 %v335, %v336
    %v341 = vmul.u32 %v335, %v337
    %v342 = vshll.u32 %v339, 16
    %v343 = vshrl.u32 %v339, 16
    %v344 = vshll.u32 %v340, 16
    %v345 = vshrl.u32 %v340, 16
    %vm346 = vc.u32 %v338, %v342
    %v347 = vsel %vm346, 1, 0
    %v348 = vadd.s32 %v338, %v342
    %v349 = vadd.s32 %v341, %v347
    %vm350 = vc.u32 %v348, %v344
    %v351 = vsel %vm350, 1, 0
    %v352 = vadd.s32 %v348, %v344
    %v353 = vadd.s32 %v349, %v351
    %v354 = vadd.s32 %v353, %v343
    %v355 = vadd.s32 %v354, %v345
    %v356 = vand.u32 %v333, 65535
    %v357 = vshrl.u32 %v333, 16
    %v358 = vand.u32 %v328, 65535
    %v359 = vshrl.u32 %v328, 16
    %v360 = vmul.u32 %v356, %v358
    %v361 = vmul.u32 %v356, %v359
    %v362 = vmul.u32 %v357, %v358
    %v363 = vmul.u32 %v357, %v359
    %v364 = vshll.u32 %v361, 16
    %v365 = vshrl.u32 %v361, 16
    %v366 = vshll.u32 %v362, 16
    %v367 = vshrl.u32 %v362, 16
    %vm368 = vc.u32 %v360, %v364
    %v369 = vsel %vm368, 1, 0
    %v370 = vadd.s32 %v360, %v364
    %v371 = vadd.s32 %v363, %v369
    %vm372 = vc.u32 %v370, %v366
    %v373 = vsel %vm372, 1, 0
    %v374 = vadd.s32 %v370, %v366
    %v375 = vadd.s32 %v371, %v373
    %v376 = vadd.s32 %v375, %v365
    %v377 = vadd.s32 %v376, %v367
    %v378 = vmul.u32 %v333, %v324
    %v379 = vadd.s32 %v355, %v374
    %vm380 = vc.u32 %v355, %v374
    %v381 = vadd.s32 %v377, 1
    %v382 = vsel %vm380, %v381, %v377
    %v383 = vadd.s32 %v378, %v382
    %v384 = vadd.s32 %v383, 536870912
    %v385 = vshrl.u32 %v384, 30
    %v386 = vshll.u32 %v385, 30
    %v387 = vsub.s32 %v383, %v386
    %vm388 = vcmp.lt.s32.totalorder %v387, 0
    %v389 = vsub.s32 0, %v387
    %v390 = vsel %vm388, %v389, %v387
    %v391 = vclz %v390
    %v392 = vsub.s32 %v391, 2
    %vm393 = vcmp.gt.s32.totalorder 0, %v392
    %v394 = vsel %vm393, 0, %v392
    %v395 = vsub.s32 32, %v394
    %v396 = vshll.u32 %v387, %v394
    %v397 = vshrl.u32 %v379, %v395
    %v398 = vor.u32 %v396, %v397
    %v399 = vsub.s32 4294967266, %v394
    %v400 = vadd.s32 %v399, 127
    %v401 = vshll.u32 %v400, 23
    %v402 = vor.u32 4788187, %v401
    %v403 = vand.u32 2147483647, %v402
    %v405 = vcvt.s32.f32 %v398
    %v406 = vmul.f32 %v405, %v403
    %v407 = vxor.u32 %v406, 2147483648
    %v408 = vsel %vm287, %v407, %v406
    %v409 = vsub.s32 4, %v385
    %v410 = vsel %vm287, %v409, %v385
    %v411 = vsel %vm286, %v284, %v408
    %v412 = vsel %vm286, 0, %v410
    %v413 = vmul.f32 %v411, %v411
    %v414 = vmul.f32 %v413, -0.001358992
    %v415 = vadd.f32 %v414, 0.041655596
    %v416 = vmul.f32 %v413, %v415
    %v417 = vadd.f32 %v416, -0.4999988
    %v418 = vmul.f32 %v413, %v417
    %v419 = vadd.f32 1.0, %v418
    %v420 = vmul.f32 %v411, %v411
    %v421 = vmul.f32 %v420, -0.00019511016
    %v422 = vadd.f32 %v421, 0.008332121
    %v423 = vmul.f32 %v420, %v422
    %v424 = vadd.f32 %v423, -0.16666654
    %v425 = vmul.f32 %v420, %v424
    %v426 = vadd.f32 %v425, 1.0
    %v427 = vmul.f32 %v426, %v411
    %vm428 = vweird.f32 %v284
    %v429 = vadd.s32 %v412, 3
    %v430 = vand.u32 %v429, 3
    %vm431 = vcmp.lt.s32.totalorder %v430, 2
    %vm432 = vcmp.eq.s32.totalorder %v430, 0
    %v433 = vxor.u32 %v427, 2147483648
    %v434 = vsel %vm432, %v419, %v433
    %vm435 = vcmp.eq.s32.totalorder %v430, 2
    %v436 = vxor.u32 %v419, 2147483648
    %v437 = vsel %vm435, %v436, %v427
    %v438 = vsel %vm431, %v434, %v437
    %v439 = vsel %vm428, nan, %v438
    %v440 = vstv %s280
    %v441 = vmul.f32 %v440, %v439
    %v442 = vadd.f32 %v279, %v441
    %s443 = sld [smem:[#allocation10 + $0x1]]
    %v444 = vmul.f32 %v107, 17.782795
    %s445 = sld [smem:[#allocation11 + $0x1]]
    %v446 = vstv %s445
    %v447 = vadd.f32 %v444, %v446
    %v448 = vand.u32 2147483647, %v447
    %vm449 = vcmp.le.f32.partialorder %v448, 0.7853982
    %vm450 = vcmp.lt.s32.totalorder %v447, 0
    %v451 = vand.u32 %v447, 2139095040
    %v452 = vshrl.u32 %v451, 23
    %v453 = vsub.s32 %v452, 127
    %v454 = vand.u32 2147483647, %v447
    %v455 = vand.u32 %v454, 8388607
    %v456 = vor.u32 %v455, 8388608
    %v457 = vsub.s32 0, %v456
    %v458 = vadd.s32 %v453, 1
    %vm459 = vcmp.gt.s32.totalorder %v458, 0
    %v460 = vsel %vm459, %v458, 0
    %v461 = vshrl.u32 %v460, 5
    %v462 = vand.u32 %v460, 31
    %v463 = vsub.s32 32, %v462
    %v464 = vshrl.u32 683565275, %v463
    %v465 = vshll.u32 683565275, %v462
    %v466 = vshrl.u32 2475754826, %v463
    %v467 = vor.u32 %v465, %v466
    %v468 = vshll.u32 2475754826, %v462
    %v469 = vshrl.u32 2131351028, %v463
    %v470 = vor.u32 %v468, %v469
    %v471 = vshll.u32 2131351028, %v462
    %v472 = vshrl.u32 2102212464, %v463
    %v473 = vor.u32 %v471, %v472
    %v474 = vshll.u32 2102212464, %v462
    %v475 = vshrl.u32 920167782, %v463
    %v476 = vor.u32 %v474, %v475
    %v477 = vshll.u32 920167782, %v462
    %v478 = vshrl.u32 1326507024, %v463
    %v479 = vor.u32 %v477, %v478
    %vm480 = vcmp.lt.s32.totalorder %v461, 1
    %vm481 = vcmp.lt.s32.totalorder %v461, 2
    %vm482 = vcmp.lt.s32.totalorder %v461, 3
    %vm483 = vcmp.lt.s32.totalorder %v461, 4
    %v484 = vsel %vm480, %v464, %v467
    %v485 = vsel %vm483, %v473, 2102212464
    %v486 = vsel %vm482, %v470, %v485
    %v487 = vsel %vm481, %v484, %v486
    %v488 = vsel %vm480, %v467, %v470
    %v489 = vsel %vm483, %v476, 920167782
    %v490 = vsel %vm482, %v473, %v489
    %v491 = vsel %vm481, %v488, %v490
    %v492 = vsel %vm480, %v470, %v473
    %v493 = vsel %vm483, %v479, 1326507024
    %v494 = vsel %vm482, %v476, %v493
    %v495 = vsel %vm481, %v492, %v494
    %v496 = vshll.u32 %v456, 8
    %v497 = vand.u32 %v496, 65535
    %v498 = vshrl.u32 %v496, 16
    %v499 = vand.u32 %v495, 65535
    %v500 = vshrl.u32 %v495, 16
    %v501 = vmul.u32 %v497, %v499
    %v502 = vmul.u32 %v497, %v500
    %v503 = vmul.u32 %v498, %v499
    %v504 = vmul.u32 %v498, %v500
    %v505 = vshll.u32 %v502, 16
    %v506 = vshrl.u32 %v502, 16
    %v507 = vshll.u32 %v503, 16
    %v508 = vshrl.u32 %v503, 16
    %vm509 = vc.u32 %v501, %v505
    %v510 = vsel %vm509, 1, 0
    %v511 = vadd.s32 %v501, %v505
    %v512 = vadd.s32 %v504, %v510
    %vm513 = vc.u32 %v511, %v507
    %v514 = vsel %vm513, 1, 0
    %v515 = vadd.s32 %v511, %v507
    %v516 = vadd.s32 %v512, %v514
    %v517 = vadd.s32 %v516, %v506
    %v518 = vadd.s32 %v517, %v508
    %v519 = vand.u32 %v496, 65535
    %v520 = vshrl.u32 %v496, 16
    %v521 = vand.u32 %v491, 65535
    %v522 = vshrl.u32 %v491, 16
    %v523 = vmul.u32 %v519, %v521
    %v524 = vmul.u32 %v519, %v522
    %v525 = vmul.u32 %v520, %v521
    %v526 = vmul.u32 %v520, %v522
    %v527 = vshll.u32 %v524, 16
    %v528 = vshrl.u32 %v524, 16
    %v529 = vshll.u32 %v525, 16
    %v530 = vshrl.u32 %v525, 16
    %vm531 = vc.u32 %v523, %v527
    %v532 = vsel %vm531, 1, 0
    %v533 = vadd.s32 %v523, %v527
    %v534 = vadd.s32 %v526, %v532
    %vm535 = vc.u32 %v533, %v529
    %v536 = vsel %vm535, 1, 0
    %v537 = vadd.s32 %v533, %v529
    %v538 = vadd.s32 %v534, %v536
    %v539 = vadd.s32 %v538, %v528
    %v540 = vadd.s32 %v539, %v530
    %v541 = vmul.u32 %v496, %v487
    %v542 = vadd.s32 %v518, %v537
    %vm543 = vc.u32 %v518, %v537
    %v544 = vadd.s32 %v540, 1
    %v545 = vsel %vm543, %v544, %v540
    %v546 = vadd.s32 %v541, %v545
    %v547 = vadd.s32 %v546, 536870912
    %v548 = vshrl.u32 %v547, 30
    %v549 = vshll.u32 %v548, 30
    %v550 = vsub.s32 %v546, %v549
    %vm551 = vcmp.lt.s32.totalorder %v550, 0
    %v552 = vsub.s32 0, %v550
    %v553 = vsel %vm551, %v552, %v550
    %v554 = vclz %v553
    %v555 = vsub.s32 %v554, 2
    %vm556 = vcmp.gt.s32.totalorder 0, %v555
    %v557 = vsel %vm556, 0, %v555
    %v558 = vsub.s32 32, %v557
    %v559 = vshll.u32 %v550, %v557
    %v560 = vshrl.u32 %v542, %v558
    %v561 = vor.u32 %v559, %v560
    %v562 = vsub.s32 4294967266, %v557
    %v563 = vadd.s32 %v562, 127
    %v564 = vshll.u32 %v563, 23
    %v565 = vor.u32 4788187, %v564
    %v566 = vand.u32 2147483647, %v565
    %v568 = vcvt.s32.f32 %v561
    %v569 = vmul.f32 %v568, %v566
    %v570 = vxor.u32 %v569, 2147483648
    %v571 = vsel %vm450, %v570, %v569
    %v572 = vsub.s32 4, %v548
    %v573 = vsel %vm450, %v572, %v548
    %v574 = vsel %vm449, %v447, %v571
    %v575 = vsel %vm449, 0, %v573
    %v576 = vmul.f32 %v574, %v574
    %v577 = vmul.f32 %v576, -0.001358992
    %v578 = vadd.f32 %v577, 0.041655596
    %v579 = vmul.f32 %v576, %v578
    %v580 = vadd.f32 %v579, -0.4999988
    %v581 = vmul.f32 %v576, %v580
    %v582 = vadd.f32 1.0, %v581
    %v583 = vmul.f32 %v574, %v574
    %v584 = vmul.f32 %v583, -0.00019511016
    %v585 = vadd.f32 %v584, 0.008332121
    %v586 = vmul.f32 %v583, %v585
    %v587 = vadd.f32 %v586, -0.16666654
    %v588 = vmul.f32 %v583, %v587
    %v589 = vadd.f32 %v588, 1.0
    %v590 = vmul.f32 %v589, %v574
    %vm591 = vweird.f32 %v447
    %v592 = vadd.s32 %v575, 3
    %v593 = vand.u32 %v592, 3
    %vm594 = vcmp.lt.s32.totalorder %v593, 2
    %vm595 = vcmp.eq.s32.totalorder %v593, 0
    %v596 = vxor.u32 %v590, 2147483648
    %v597 = vsel %vm595, %v582, %v596
    %vm598 = vcmp.eq.s32.totalorder %v593, 2
    %v599 = vxor.u32 %v582, 2147483648
    %v600 = vsel %vm598, %v599, %v590
    %v601 = vsel %vm594, %v597, %v600
    %v602 = vsel %vm591, nan, %v601
    %v603 = vstv %s443
    %v604 = vmul.f32 %v603, %v602
    %v605 = vadd.f32 %v442, %v604
    %s606 = sld [smem:[#allocation10 + $0x81]]
    %v607 = vmul.f32 %v116, 17.782795
    %s608 = sld [smem:[#allocation11 + $0x81]]
    %v609 = vstv %s608
    %v610 = vadd.f32 %v607, %v609
    %v611 = vand.u32 2147483647, %v610
    %vm612 = vcmp.le.f32.partialorder %v611, 0.7853982
    %vm613 = vcmp.lt.s32.totalorder %v610, 0
    %v614 = vand.u32 %v610, 2139095040
    %v615 = vshrl.u32 %v614, 23
    %v616 = vsub.s32 %v615, 127
    %v617 = vand.u32 2147483647, %v610
    %v618 = vand.u32 %v617, 8388607
    %v619 = vor.u32 %v618, 8388608
    %v620 = vsub.s32 0, %v619
    %v621 = vadd.s32 %v616, 1
    %vm622 = vcmp.gt.s32.totalorder %v621, 0
    %v623 = vsel %vm622, %v621, 0
    %v624 = vshrl.u32 %v623, 5
    %v625 = vand.u32 %v623, 31
    %v626 = vsub.s32 32, %v625
    %v627 = vshrl.u32 683565275, %v626
    %v628 = vshll.u32 683565275, %v625
    %v629 = vshrl.u32 2475754826, %v626
    %v630 = vor.u32 %v628, %v629
    %v631 = vshll.u32 2475754826, %v625
    %v632 = vshrl.u32 2131351028, %v626
    %v633 = vor.u32 %v631, %v632
    %v634 = vshll.u32 2131351028, %v625
    %v635 = vshrl.u32 2102212464, %v626
    %v636 = vor.u32 %v634, %v635
    %v637 = vshll.u32 2102212464, %v625
    %v638 = vshrl.u32 920167782, %v626
    %v639 = vor.u32 %v637, %v638
    %v640 = vshll.u32 920167782, %v625
    %v641 = vshrl.u32 1326507024, %v626
    %v642 = vor.u32 %v640, %v641
    %vm643 = vcmp.lt.s32.totalorder %v624, 1
    %vm644 = vcmp.lt.s32.totalorder %v624, 2
    %vm645 = vcmp.lt.s32.totalorder %v624, 3
    %vm646 = vcmp.lt.s32.totalorder %v624, 4
    %v647 = vsel %vm643, %v627, %v630
    %v648 = vsel %vm646, %v636, 2102212464
    %v649 = vsel %vm645, %v633, %v648
    %v650 = vsel %vm644, %v647, %v649
    %v651 = vsel %vm643, %v630, %v633
    %v652 = vsel %vm646, %v639, 920167782
    %v653 = vsel %vm645, %v636, %v652
    %v654 = vsel %vm644, %v651, %v653
    %v655 = vsel %vm643, %v633, %v636
    %v656 = vsel %vm646, %v642, 1326507024
    %v657 = vsel %vm645, %v639, %v656
    %v658 = vsel %vm644, %v655, %v657
    %v659 = vshll.u32 %v619, 8
    %v660 = vand.u32 %v659, 65535
    %v661 = vshrl.u32 %v659, 16
    %v662 = vand.u32 %v658, 65535
    %v663 = vshrl.u32 %v658, 16
    %v664 = vmul.u32 %v660, %v662
    %v665 = vmul.u32 %v660, %v663
    %v666 = vmul.u32 %v661, %v662
    %v667 = vmul.u32 %v661, %v663
    %v668 = vshll.u32 %v665, 16
    %v669 = vshrl.u32 %v665, 16
    %v670 = vshll.u32 %v666, 16
    %v671 = vshrl.u32 %v666, 16
    %vm672 = vc.u32 %v664, %v668
    %v673 = vsel %vm672, 1, 0
    %v674 = vadd.s32 %v664, %v668
    %v675 = vadd.s32 %v667, %v673
    %vm676 = vc.u32 %v674, %v670
    %v677 = vsel %vm676, 1, 0
    %v678 = vadd.s32 %v674, %v670
    %v679 = vadd.s32 %v675, %v677
    %v680 = vadd.s32 %v679, %v669
    %v681 = vadd.s32 %v680, %v671
    %v682 = vand.u32 %v659, 65535
    %v683 = vshrl.u32 %v659, 16
    %v684 = vand.u32 %v654, 65535
    %v685 = vshrl.u32 %v654, 16
    %v686 = vmul.u32 %v682, %v684
    %v687 = vmul.u32 %v682, %v685
    %v688 = vmul.u32 %v683, %v684
    %v689 = vmul.u32 %v683, %v685
    %v690 = vshll.u32 %v687, 16
    %v691 = vshrl.u32 %v687, 16
    %v692 = vshll.u32 %v688, 16
    %v693 = vshrl.u32 %v688, 16
    %vm694 = vc.u32 %v686, %v690
    %v695 = vsel %vm694, 1, 0
    %v696 = vadd.s32 %v686, %v690
    %v697 = vadd.s32 %v689, %v695
    %vm698 = vc.u32 %v696, %v692
    %v699 = vsel %vm698, 1, 0
    %v700 = vadd.s32 %v696, %v692
    %v701 = vadd.s32 %v697, %v699
    %v702 = vadd.s32 %v701, %v691
    %v703 = vadd.s32 %v702, %v693
    %v704 = vmul.u32 %v659, %v650
    %v705 = vadd.s32 %v681, %v700
    %vm706 = vc.u32 %v681, %v700
    %v707 = vadd.s32 %v703, 1
    %v708 = vsel %vm706, %v707, %v703
    %v709 = vadd.s32 %v704, %v708
    %v710 = vadd.s32 %v709, 536870912
    %v711 = vshrl.u32 %v710, 30
    %v712 = vshll.u32 %v711, 30
    %v713 = vsub.s32 %v709, %v712
    %vm714 = vcmp.lt.s32.totalorder %v713, 0
    %v715 = vsub.s32 0, %v713
    %v716 = vsel %vm714, %v715, %v713
    %v717 = vclz %v716
    %v718 = vsub.s32 %v717, 2
    %vm719 = vcmp.gt.s32.totalorder 0, %v718
    %v720 = vsel %vm719, 0, %v718
    %v721 = vsub.s32 32, %v720
    %v722 = vshll.u32 %v713, %v720
    %v723 = vshrl.u32 %v705, %v721
    %v724 = vor.u32 %v722, %v723
    %v725 = vsub.s32 4294967266, %v720
    %v726 = vadd.s32 %v725, 127
    %v727 = vshll.u32 %v726, 23
    %v728 = vor.u32 4788187, %v727
    %v729 = vand.u32 2147483647, %v728
    %v731 = vcvt.s32.f32 %v724
    %v732 = vmul.f32 %v731, %v729
    %v733 = vxor.u32 %v732, 2147483648
    %v734 = vsel %vm613, %v733, %v732
    %v735 = vsub.s32 4, %v711
    %v736 = vsel %vm613, %v735, %v711
    %v737 = vsel %vm612, %v610, %v734
    %v738 = vsel %vm612, 0, %v736
    %v739 = vmul.f32 %v737, %v737
    %v740 = vmul.f32 %v739, -0.001358992
    %v741 = vadd.f32 %v740, 0.041655596
    %v742 = vmul.f32 %v739, %v741
    %v743 = vadd.f32 %v742, -0.4999988
    %v744 = vmul.f32 %v739, %v743
    %v745 = vadd.f32 1.0, %v744
    %v746 = vmul.f32 %v737, %v737
    %v747 = vmul.f32 %v746, -0.00019511016
    %v748 = vadd.f32 %v747, 0.008332121
    %v749 = vmul.f32 %v746, %v748
    %v750 = vadd.f32 %v749, -0.16666654
    %v751 = vmul.f32 %v746, %v750
    %v752 = vadd.f32 %v751, 1.0
    %v753 = vmul.f32 %v752, %v737
    %vm754 = vweird.f32 %v610
    %v755 = vadd.s32 %v738, 3
    %v756 = vand.u32 %v755, 3
    %vm757 = vcmp.lt.s32.totalorder %v756, 2
    %vm758 = vcmp.eq.s32.totalorder %v756, 0
    %v759 = vxor.u32 %v753, 2147483648
    %v760 = vsel %vm758, %v745, %v759
    %vm761 = vcmp.eq.s32.totalorder %v756, 2
    %v762 = vxor.u32 %v745, 2147483648
    %v763 = vsel %vm761, %v762, %v753
    %v764 = vsel %vm757, %v760, %v763
    %v765 = vsel %vm754, nan, %v764
    %v766 = vstv %s606
    %v767 = vmul.f32 %v766, %v765
    %v768 = vadd.f32 %v605, %v767
    %s769 = sld [smem:[#allocation10 + $0x2]]
    %v770 = vmul.f32 %v107, 3.1622777
    %s771 = sld [smem:[#allocation11 + $0x2]]
    %v772 = vstv %s771
    %v773 = vadd.f32 %v770, %v772
    %v774 = vand.u32 2147483647, %v773
    %vm775 = vcmp.le.f32.partialorder %v774, 0.7853982
    %vm776 = vcmp.lt.s32.totalorder %v773, 0
    %v777 = vand.u32 %v773, 2139095040
    %v778 = vshrl.u32 %v777, 23
    %v779 = vsub.s32 %v778, 127
    %v780 = vand.u32 2147483647, %v773
    %v781 = vand.u32 %v780, 8388607
    %v782 = vor.u32 %v781, 8388608
    %v783 = vsub.s32 0, %v782
    %v784 = vadd.s32 %v779, 1
    %vm785 = vcmp.gt.s32.totalorder %v784, 0
    %v786 = vsel %vm785, %v784, 0
    %v787 = vshrl.u32 %v786, 5
    %v788 = vand.u32 %v786, 31
    %v789 = vsub.s32 32, %v788
    %v790 = vshrl.u32 683565275, %v789
    %v791 = vshll.u32 683565275, %v788
    %v792 = vshrl.u32 2475754826, %v789
    %v793 = vor.u32 %v791, %v792
    %v794 = vshll.u32 2475754826, %v788
    %v795 = vshrl.u32 2131351028, %v789
    %v796 = vor.u32 %v794, %v795
    %v797 = vshll.u32 2131351028, %v788
    %v798 = vshrl.u32 2102212464, %v789
    %v799 = vor.u32 %v797, %v798
    %v800 = vshll.u32 2102212464, %v788
    %v801 = vshrl.u32 920167782, %v789
    %v802 = vor.u32 %v800, %v801
    %v803 = vshll.u32 920167782, %v788
    %v804 = vshrl.u32 1326507024, %v789
    %v805 = vor.u32 %v803, %v804
    %vm806 = vcmp.lt.s32.totalorder %v787, 1
    %vm807 = vcmp.lt.s32.totalorder %v787, 2
    %vm808 = vcmp.lt.s32.totalorder %v787, 3
    %vm809 = vcmp.lt.s32.totalorder %v787, 4
    %v810 = vsel %vm806, %v790, %v793
    %v811 = vsel %vm809, %v799, 2102212464
    %v812 = vsel %vm808, %v796, %v811
    %v813 = vsel %vm807, %v810, %v812
    %v814 = vsel %vm806, %v793, %v796
    %v815 = vsel %vm809, %v802, 920167782
    %v816 = vsel %vm808, %v799, %v815
    %v817 = vsel %vm807, %v814, %v816
    %v818 = vsel %vm806, %v796, %v799
    %v819 = vsel %vm809, %v805, 1326507024
    %v820 = vsel %vm808, %v802, %v819
    %v821 = vsel %vm807, %v818, %v820
    %v822 = vshll.u32 %v782, 8
    %v823 = vand.u32 %v822, 65535
    %v824 = vshrl.u32 %v822, 16
    %v825 = vand.u32 %v821, 65535
    %v826 = vshrl.u32 %v821, 16
    %v827 = vmul.u32 %v823, %v825
    %v828 = vmul.u32 %v823, %v826
    %v829 = vmul.u32 %v824, %v825
    %v830 = vmul.u32 %v824, %v826
    %v831 = vshll.u32 %v828, 16
    %v832 = vshrl.u32 %v828, 16
    %v833 = vshll.u32 %v829, 16
    %v834 = vshrl.u32 %v829, 16
    %vm835 = vc.u32 %v827, %v831
    %v836 = vsel %vm835, 1, 0
    %v837 = vadd.s32 %v827, %v831
    %v838 = vadd.s32 %v830, %v836
    %vm839 = vc.u32 %v837, %v833
    %v840 = vsel %vm839, 1, 0
    %v841 = vadd.s32 %v837, %v833
    %v842 = vadd.s32 %v838, %v840
    %v843 = vadd.s32 %v842, %v832
    %v844 = vadd.s32 %v843, %v834
    %v845 = vand.u32 %v822, 65535
    %v846 = vshrl.u32 %v822, 16
    %v847 = vand.u32 %v817, 65535
    %v848 = vshrl.u32 %v817, 16
    %v849 = vmul.u32 %v845, %v847
    %v850 = vmul.u32 %v845, %v848
    %v851 = vmul.u32 %v846, %v847
    %v852 = vmul.u32 %v846, %v848
    %v853 = vshll.u32 %v850, 16
    %v854 = vshrl.u32 %v850, 16
    %v855 = vshll.u32 %v851, 16
    %v856 = vshrl.u32 %v851, 16
    %vm857 = vc.u32 %v849, %v853
    %v858 = vsel %vm857, 1, 0
    %v859 = vadd.s32 %v849, %v853
    %v860 = vadd.s32 %v852, %v858
    %vm861 = vc.u32 %v859, %v855
    %v862 = vsel %vm861, 1, 0
    %v863 = vadd.s32 %v859, %v855
    %v864 = vadd.s32 %v860, %v862
    %v865 = vadd.s32 %v864, %v854
    %v866 = vadd.s32 %v865, %v856
    %v867 = vmul.u32 %v822, %v813
    %v868 = vadd.s32 %v844, %v863
    %vm869 = vc.u32 %v844, %v863
    %v870 = vadd.s32 %v866, 1
    %v871 = vsel %vm869, %v870, %v866
    %v872 = vadd.s32 %v867, %v871
    %v873 = vadd.s32 %v872, 536870912
    %v874 = vshrl.u32 %v873, 30
    %v875 = vshll.u32 %v874, 30
    %v876 = vsub.s32 %v872, %v875
    %vm877 = vcmp.lt.s32.totalorder %v876, 0
    %v878 = vsub.s32 0, %v876
    %v879 = vsel %vm877, %v878, %v876
    %v880 = vclz %v879
    %v881 = vsub.s32 %v880, 2
    %vm882 = vcmp.gt.s32.totalorder 0, %v881
    %v883 = vsel %vm882, 0, %v881
    %v884 = vsub.s32 32, %v883
    %v885 = vshll.u32 %v876, %v883
    %v886 = vshrl.u32 %v868, %v884
    %v887 = vor.u32 %v885, %v886
    %v888 = vsub.s32 4294967266, %v883
    %v889 = vadd.s32 %v888, 127
    %v890 = vshll.u32 %v889, 23
    %v891 = vor.u32 4788187, %v890
    %v892 = vand.u32 2147483647, %v891
    %v894 = vcvt.s32.f32 %v887
    %v895 = vmul.f32 %v894, %v892
    %v896 = vxor.u32 %v895, 2147483648
    %v897 = vsel %vm776, %v896, %v895
    %v898 = vsub.s32 4, %v874
    %v899 = vsel %vm776, %v898, %v874
    %v900 = vsel %vm775, %v773, %v897
    %v901 = vsel %vm775, 0, %v899
    %v902 = vmul.f32 %v900, %v900
    %v903 = vmul.f32 %v902, -0.001358992
    %v904 = vadd.f32 %v903, 0.041655596
    %v905 = vmul.f32 %v902, %v904
    %v906 = vadd.f32 %v905, -0.4999988
    %v907 = vmul.f32 %v902, %v906
    %v908 = vadd.f32 1.0, %v907
    %v909 = vmul.f32 %v900, %v900
    %v910 = vmul.f32 %v909, -0.00019511016
    %v911 = vadd.f32 %v910, 0.008332121
    %v912 = vmul.f32 %v909, %v911
    %v913 = vadd.f32 %v912, -0.16666654
    %v914 = vmul.f32 %v909, %v913
    %v915 = vadd.f32 %v914, 1.0
    %v916 = vmul.f32 %v915, %v900
    %vm917 = vweird.f32 %v773
    %v918 = vadd.s32 %v901, 3
    %v919 = vand.u32 %v918, 3
    %vm920 = vcmp.lt.s32.totalorder %v919, 2
    %vm921 = vcmp.eq.s32.totalorder %v919, 0
    %v922 = vxor.u32 %v916, 2147483648
    %v923 = vsel %vm921, %v908, %v922
    %vm924 = vcmp.eq.s32.totalorder %v919, 2
    %v925 = vxor.u32 %v908, 2147483648
    %v926 = vsel %vm924, %v925, %v916
    %v927 = vsel %vm920, %v923, %v926
    %v928 = vsel %vm917, nan, %v927
    %v929 = vstv %s769
    %v930 = vmul.f32 %v929, %v928
    %v931 = vadd.f32 %v768, %v930
    %s932 = sld [smem:[#allocation10 + $0x82]]
    %v933 = vmul.f32 %v116, 3.1622777
    %s934 = sld [smem:[#allocation11 + $0x82]]
    %v935 = vstv %s934
    %v936 = vadd.f32 %v933, %v935
    %v937 = vand.u32 2147483647, %v936
    %vm938 = vcmp.le.f32.partialorder %v937, 0.7853982
    %vm939 = vcmp.lt.s32.totalorder %v936, 0
    %v940 = vand.u32 %v936, 2139095040
    %v941 = vshrl.u32 %v940, 23
    %v942 = vsub.s32 %v941, 127
    %v943 = vand.u32 2147483647, %v936
    %v944 = vand.u32 %v943, 8388607
    %v945 = vor.u32 %v944, 8388608
    %v946 = vsub.s32 0, %v945
    %v947 = vadd.s32 %v942, 1
    %vm948 = vcmp.gt.s32.totalorder %v947, 0
    %v949 = vsel %vm948, %v947, 0
    %v950 = vshrl.u32 %v949, 5
    %v951 = vand.u32 %v949, 31
    %v952 = vsub.s32 32, %v951
    %v953 = vshrl.u32 683565275, %v952
    %v954 = vshll.u32 683565275, %v951
    %v955 = vshrl.u32 2475754826, %v952
    %v956 = vor.u32 %v954, %v955
    %v957 = vshll.u32 2475754826, %v951
    %v958 = vshrl.u32 2131351028, %v952
    %v959 = vor.u32 %v957, %v958
    %v960 = vshll.u32 2131351028, %v951
    %v961 = vshrl.u32 2102212464, %v952
    %v962 = vor.u32 %v960, %v961
    %v963 = vshll.u32 2102212464, %v951
    %v964 = vshrl.u32 920167782, %v952
    %v965 = vor.u32 %v963, %v964
    %v966 = vshll.u32 920167782, %v951
    %v967 = vshrl.u32 1326507024, %v952
    %v968 = vor.u32 %v966, %v967
    %vm969 = vcmp.lt.s32.totalorder %v950, 1
    %vm970 = vcmp.lt.s32.totalorder %v950, 2
    %vm971 = vcmp.lt.s32.totalorder %v950, 3
    %vm972 = vcmp.lt.s32.totalorder %v950, 4
    %v973 = vsel %vm969, %v953, %v956
    %v974 = vsel %vm972, %v962, 2102212464
    %v975 = vsel %vm971, %v959, %v974
    %v976 = vsel %vm970, %v973, %v975
    %v977 = vsel %vm969, %v956, %v959
    %v978 = vsel %vm972, %v965, 920167782
    %v979 = vsel %vm971, %v962, %v978
    %v980 = vsel %vm970, %v977, %v979
    %v981 = vsel %vm969, %v959, %v962
    %v982 = vsel %vm972, %v968, 1326507024
    %v983 = vsel %vm971, %v965, %v982
    %v984 = vsel %vm970, %v981, %v983
    %v985 = vshll.u32 %v945, 8
    %v986 = vand.u32 %v985, 65535
    %v987 = vshrl.u32 %v985, 16
    %v988 = vand.u32 %v984, 65535
    %v989 = vshrl.u32 %v984, 16
    %v990 = vmul.u32 %v986, %v988
    %v991 = vmul.u32 %v986, %v989
    %v992 = vmul.u32 %v987, %v988
    %v993 = vmul.u32 %v987, %v989
    %v994 = vshll.u32 %v991, 16
    %v995 = vshrl.u32 %v991, 16
    %v996 = vshll.u32 %v992, 16
    %v997 = vshrl.u32 %v992, 16
    %vm998 = vc.u32 %v990, %v994
    %v999 = vsel %vm998, 1, 0
    %v1000 = vadd.s32 %v990, %v994
    %v1001 = vadd.s32 %v993, %v999
    %vm1002 = vc.u32 %v1000, %v996
    %v1003 = vsel %vm1002, 1, 0
    %v1004 = vadd.s32 %v1000, %v996
    %v1005 = vadd.s32 %v1001, %v1003
    %v1006 = vadd.s32 %v1005, %v995
    %v1007 = vadd.s32 %v1006, %v997
    %v1008 = vand.u32 %v985, 65535
    %v1009 = vshrl.u32 %v985, 16
    %v1010 = vand.u32 %v980, 65535
    %v1011 = vshrl.u32 %v980, 16
    %v1012 = vmul.u32 %v1008, %v1010
    %v1013 = vmul.u32 %v1008, %v1011
    %v1014 = vmul.u32 %v1009, %v1010
    %v1015 = vmul.u32 %v1009, %v1011
    %v1016 = vshll.u32 %v1013, 16
    %v1017 = vshrl.u32 %v1013, 16
    %v1018 = vshll.u32 %v1014, 16
    %v1019 = vshrl.u32 %v1014, 16
    %vm1020 = vc.u32 %v1012, %v1016
    %v1021 = vsel %vm1020, 1, 0
    %v1022 = vadd.s32 %v1012, %v1016
    %v1023 = vadd.s32 %v1015, %v1021
    %vm1024 = vc.u32 %v1022, %v1018
    %v1025 = vsel %vm1024, 1, 0
    %v1026 = vadd.s32 %v1022, %v1018
    %v1027 = vadd.s32 %v1023, %v1025
    %v1028 = vadd.s32 %v1027, %v1017
    %v1029 = vadd.s32 %v1028, %v1019
    %v1030 = vmul.u32 %v985, %v976
    %v1031 = vadd.s32 %v1007, %v1026
    %vm1032 = vc.u32 %v1007, %v1026
    %v1033 = vadd.s32 %v1029, 1
    %v1034 = vsel %vm1032, %v1033, %v1029
    %v1035 = vadd.s32 %v1030, %v1034
    %v1036 = vadd.s32 %v1035, 536870912
    %v1037 = vshrl.u32 %v1036, 30
    %v1038 = vshll.u32 %v1037, 30
    %v1039 = vsub.s32 %v1035, %v1038
    %vm1040 = vcmp.lt.s32.totalorder %v1039, 0
    %v1041 = vsub.s32 0, %v1039
    %v1042 = vsel %vm1040, %v1041, %v1039
    %v1043 = vclz %v1042
    %v1044 = vsub.s32 %v1043, 2
    %vm1045 = vcmp.gt.s32.totalorder 0, %v1044
    %v1046 = vsel %vm1045, 0, %v1044
    %v1047 = vsub.s32 32, %v1046
    %v1048 = vshll.u32 %v1039, %v1046
    %v1049 = vshrl.u32 %v1031, %v1047
    %v1050 = vor.u32 %v1048, %v1049
    %v1051 = vsub.s32 4294967266, %v1046
    %v1052 = vadd.s32 %v1051, 127
    %v1053 = vshll.u32 %v1052, 23
    %v1054 = vor.u32 4788187, %v1053
    %v1055 = vand.u32 2147483647, %v1054
    %v1057 = vcvt.s32.f32 %v1050
    %v1058 = vmul.f32 %v1057, %v1055
    %v1059 = vxor.u32 %v1058, 2147483648
    %v1060 = vsel %vm939, %v1059, %v1058
    %v1061 = vsub.s32 4, %v1037
    %v1062 = vsel %vm939, %v1061, %v1037
    %v1063 = vsel %vm938, %v936, %v1060
    %v1064 = vsel %vm938, 0, %v1062
    %v1065 = vmul.f32 %v1063, %v1063
    %v1066 = vmul.f32 %v1065, -0.001358992
    %v1067 = vadd.f32 %v1066, 0.041655596
    %v1068 = vmul.f32 %v1065, %v1067
    %v1069 = vadd.f32 %v1068, -0.4999988
    %v1070 = vmul.f32 %v1065, %v1069
    %v1071 = vadd.f32 1.0, %v1070
    %v1072 = vmul.f32 %v1063, %v1063
    %v1073 = vmul.f32 %v1072, -0.00019511016
    %v1074 = vadd.f32 %v1073, 0.008332121
    %v1075 = vmul.f32 %v1072, %v1074
    %v1076 = vadd.f32 %v1075, -0.16666654
    %v1077 = vmul.f32 %v1072, %v1076
    %v1078 = vadd.f32 %v1077, 1.0
    %v1079 = vmul.f32 %v1078, %v1063
    %vm1080 = vweird.f32 %v936
    %v1081 = vadd.s32 %v1064, 3
    %v1082 = vand.u32 %v1081, 3
    %vm1083 = vcmp.lt.s32.totalorder %v1082, 2
    %vm1084 = vcmp.eq.s32.totalorder %v1082, 0
    %v1085 = vxor.u32 %v1079, 2147483648
    %v1086 = vsel %vm1084, %v1071, %v1085
    %vm1087 = vcmp.eq.s32.totalorder %v1082, 2
    %v1088 = vxor.u32 %v1071, 2147483648
    %v1089 = vsel %vm1087, %v1088, %v1079
    %v1090 = vsel %vm1083, %v1086, %v1089
    %v1091 = vsel %vm1080, nan, %v1090
    %v1092 = vstv %s932
    %v1093 = vmul.f32 %v1092, %v1091
    %v1094 = vadd.f32 %v931, %v1093
    %s1095 = sld [smem:[#allocation10 + $0x3]]
    %v1096 = vmul.f32 %v107, 0.56234133
    %s1097 = sld [smem:[#allocation11 + $0x3]]
    %v1098 = vstv %s1097
    %v1099 = vadd.f32 %v1096, %v1098
    %v1100 = vand.u32 2147483647, %v1099
    %vm1101 = vcmp.le.f32.partialorder %v1100, 0.7853982
    %vm1102 = vcmp.lt.s32.totalorder %v1099, 0
    %v1103 = vand.u32 %v1099, 2139095040
    %v1104 = vshrl.u32 %v1103, 23
    %v1105 = vsub.s32 %v1104, 127
    %v1106 = vand.u32 2147483647, %v1099
    %v1107 = vand.u32 %v1106, 8388607
    %v1108 = vor.u32 %v1107, 8388608
    %v1109 = vsub.s32 0, %v1108
    %v1110 = vadd.s32 %v1105, 1
    %vm1111 = vcmp.gt.s32.totalorder %v1110, 0
    %v1112 = vsel %vm1111, %v1110, 0
    %v1113 = vshrl.u32 %v1112, 5
    %v1114 = vand.u32 %v1112, 31
    %v1115 = vsub.s32 32, %v1114
    %v1116 = vshrl.u32 683565275, %v1115
    %v1117 = vshll.u32 683565275, %v1114
    %v1118 = vshrl.u32 2475754826, %v1115
    %v1119 = vor.u32 %v1117, %v1118
    %v1120 = vshll.u32 2475754826, %v1114
    %v1121 = vshrl.u32 2131351028, %v1115
    %v1122 = vor.u32 %v1120, %v1121
    %v1123 = vshll.u32 2131351028, %v1114
    %v1124 = vshrl.u32 2102212464, %v1115
    %v1125 = vor.u32 %v1123, %v1124
    %v1126 = vshll.u32 2102212464, %v1114
    %v1127 = vshrl.u32 920167782, %v1115
    %v1128 = vor.u32 %v1126, %v1127
    %v1129 = vshll.u32 920167782, %v1114
    %v1130 = vshrl.u32 1326507024, %v1115
    %v1131 = vor.u32 %v1129, %v1130
    %vm1132 = vcmp.lt.s32.totalorder %v1113, 1
    %vm1133 = vcmp.lt.s32.totalorder %v1113, 2
    %vm1134 = vcmp.lt.s32.totalorder %v1113, 3
    %vm1135 = vcmp.lt.s32.totalorder %v1113, 4
    %v1136 = vsel %vm1132, %v1116, %v1119
    %v1137 = vsel %vm1135, %v1125, 2102212464
    %v1138 = vsel %vm1134, %v1122, %v1137
    %v1139 = vsel %vm1133, %v1136, %v1138
    %v1140 = vsel %vm1132, %v1119, %v1122
    %v1141 = vsel %vm1135, %v1128, 920167782
    %v1142 = vsel %vm1134, %v1125, %v1141
    %v1143 = vsel %vm1133, %v1140, %v1142
    %v1144 = vsel %vm1132, %v1122, %v1125
    %v1145 = vsel %vm1135, %v1131, 1326507024
    %v1146 = vsel %vm1134, %v1128, %v1145
    %v1147 = vsel %vm1133, %v1144, %v1146
    %v1148 = vshll.u32 %v1108, 8
    %v1149 = vand.u32 %v1148, 65535
    %v1150 = vshrl.u32 %v1148, 16
    %v1151 = vand.u32 %v1147, 65535
    %v1152 = vshrl.u32 %v1147, 16
    %v1153 = vmul.u32 %v1149, %v1151
    %v1154 = vmul.u32 %v1149, %v1152
    %v1155 = vmul.u32 %v1150, %v1151
    %v1156 = vmul.u32 %v1150, %v1152
    %v1157 = vshll.u32 %v1154, 16
    %v1158 = vshrl.u32 %v1154, 16
    %v1159 = vshll.u32 %v1155, 16
    %v1160 = vshrl.u32 %v1155, 16
    %vm1161 = vc.u32 %v1153, %v1157
    %v1162 = vsel %vm1161, 1, 0
    %v1163 = vadd.s32 %v1153, %v1157
    %v1164 = vadd.s32 %v1156, %v1162
    %vm1165 = vc.u32 %v1163, %v1159
    %v1166 = vsel %vm1165, 1, 0
    %v1167 = vadd.s32 %v1163, %v1159
    %v1168 = vadd.s32 %v1164, %v1166
    %v1169 = vadd.s32 %v1168, %v1158
    %v1170 = vadd.s32 %v1169, %v1160
    %v1171 = vand.u32 %v1148, 65535
    %v1172 = vshrl.u32 %v1148, 16
    %v1173 = vand.u32 %v1143, 65535
    %v1174 = vshrl.u32 %v1143, 16
    %v1175 = vmul.u32 %v1171, %v1173
    %v1176 = vmul.u32 %v1171, %v1174
    %v1177 = vmul.u32 %v1172, %v1173
    %v1178 = vmul.u32 %v1172, %v1174
    %v1179 = vshll.u32 %v1176, 16
    %v1180 = vshrl.u32 %v1176, 16
    %v1181 = vshll.u32 %v1177, 16
    %v1182 = vshrl.u32 %v1177, 16
    %vm1183 = vc.u32 %v1175, %v1179
    %v1184 = vsel %vm1183, 1, 0
    %v1185 = vadd.s32 %v1175, %v1179
    %v1186 = vadd.s32 %v1178, %v1184
    %vm1187 = vc.u32 %v1185, %v1181
    %v1188 = vsel %vm1187, 1, 0
    %v1189 = vadd.s32 %v1185, %v1181
    %v1190 = vadd.s32 %v1186, %v1188
    %v1191 = vadd.s32 %v1190, %v1180
    %v1192 = vadd.s32 %v1191, %v1182
    %v1193 = vmul.u32 %v1148, %v1139
    %v1194 = vadd.s32 %v1170, %v1189
    %vm1195 = vc.u32 %v1170, %v1189
    %v1196 = vadd.s32 %v1192, 1
    %v1197 = vsel %vm1195, %v1196, %v1192
    %v1198 = vadd.s32 %v1193, %v1197
    %v1199 = vadd.s32 %v1198, 536870912
    %v1200 = vshrl.u32 %v1199, 30
    %v1201 = vshll.u32 %v1200, 30
    %v1202 = vsub.s32 %v1198, %v1201
    %vm1203 = vcmp.lt.s32.totalorder %v1202, 0
    %v1204 = vsub.s32 0, %v1202
    %v1205 = vsel %vm1203, %v1204, %v1202
    %v1206 = vclz %v1205
    %v1207 = vsub.s32 %v1206, 2
    %vm1208 = vcmp.gt.s32.totalorder 0, %v1207
    %v1209 = vsel %vm1208, 0, %v1207
    %v1210 = vsub.s32 32, %v1209
    %v1211 = vshll.u32 %v1202, %v1209
    %v1212 = vshrl.u32 %v1194, %v1210
    %v1213 = vor.u32 %v1211, %v1212
    %v1214 = vsub.s32 4294967266, %v1209
    %v1215 = vadd.s32 %v1214, 127
    %v1216 = vshll.u32 %v1215, 23
    %v1217 = vor.u32 4788187, %v1216
    %v1218 = vand.u32 2147483647, %v1217
    %v1220 = vcvt.s32.f32 %v1213
    %v1221 = vmul.f32 %v1220, %v1218
    %v1222 = vxor.u32 %v1221, 2147483648
    %v1223 = vsel %vm1102, %v1222, %v1221
    %v1224 = vsub.s32 4, %v1200
    %v1225 = vsel %vm1102, %v1224, %v1200
    %v1226 = vsel %vm1101, %v1099, %v1223
    %v1227 = vsel %vm1101, 0, %v1225
    %v1228 = vmul.f32 %v1226, %v1226
    %v1229 = vmul.f32 %v1228, -0.001358992
    %v1230 = vadd.f32 %v1229, 0.041655596
    %v1231 = vmul.f32 %v1228, %v1230
    %v1232 = vadd.f32 %v1231, -0.4999988
    %v1233 = vmul.f32 %v1228, %v1232
    %v1234 = vadd.f32 1.0, %v1233
    %v1235 = vmul.f32 %v1226, %v1226
    %v1236 = vmul.f32 %v1235, -0.00019511016
    %v1237 = vadd.f32 %v1236, 0.008332121
    %v1238 = vmul.f32 %v1235, %v1237
    %v1239 = vadd.f32 %v1238, -0.16666654
    %v1240 = vmul.f32 %v1235, %v1239
    %v1241 = vadd.f32 %v1240, 1.0
    %v1242 = vmul.f32 %v1241, %v1226
    %vm1243 = vweird.f32 %v1099
    %v1244 = vadd.s32 %v1227, 3
    %v1245 = vand.u32 %v1244, 3
    %vm1246 = vcmp.lt.s32.totalorder %v1245, 2
    %vm1247 = vcmp.eq.s32.totalorder %v1245, 0
    %v1248 = vxor.u32 %v1242, 2147483648
    %v1249 = vsel %vm1247, %v1234, %v1248
    %vm1250 = vcmp.eq.s32.totalorder %v1245, 2
    %v1251 = vxor.u32 %v1234, 2147483648
    %v1252 = vsel %vm1250, %v1251, %v1242
    %v1253 = vsel %vm1246, %v1249, %v1252
    %v1254 = vsel %vm1243, nan, %v1253
    %v1255 = vstv %s1095
    %v1256 = vmul.f32 %v1255, %v1254
    %v1257 = vadd.f32 %v1094, %v1256
    %s1258 = sld [smem:[#allocation10 + $0x83]]
    %v1259 = vmul.f32 %v116, 0.56234133
    %s1260 = sld [smem:[#allocation11 + $0x83]]
    %v1261 = vstv %s1260
    %v1262 = vadd.f32 %v1259, %v1261
    %v1263 = vand.u32 2147483647, %v1262
    %vm1264 = vcmp.le.f32.partialorder %v1263, 0.7853982
    %vm1265 = vcmp.lt.s32.totalorder %v1262, 0
    %v1266 = vand.u32 %v1262, 2139095040
    %v1267 = vshrl.u32 %v1266, 23
    %v1268 = vsub.s32 %v1267, 127
    %v1269 = vand.u32 2147483647, %v1262
    %v1270 = vand.u32 %v1269, 8388607
    %v1271 = vor.u32 %v1270, 8388608
    %v1272 = vsub.s32 0, %v1271
    %v1273 = vadd.s32 %v1268, 1
    %vm1274 = vcmp.gt.s32.totalorder %v1273, 0
    %v1275 = vsel %vm1274, %v1273, 0
    %v1276 = vshrl.u32 %v1275, 5
    %v1277 = vand.u32 %v1275, 31
    %v1278 = vsub.s32 32, %v1277
    %v1279 = vshrl.u32 683565275, %v1278
    %v1280 = vshll.u32 683565275, %v1277
    %v1281 = vshrl.u32 2475754826, %v1278
    %v1282 = vor.u32 %v1280, %v1281
    %v1283 = vshll.u32 2475754826, %v1277
    %v1284 = vshrl.u32 2131351028, %v1278
    %v1285 = vor.u32 %v1283, %v1284
    %v1286 = vshll.u32 2131351028, %v1277
    %v1287 = vshrl.u32 2102212464, %v1278
    %v1288 = vor.u32 %v1286, %v1287
    %v1289 = vshll.u32 2102212464, %v1277
    %v1290 = vshrl.u32 920167782, %v1278
    %v1291 = vor.u32 %v1289, %v1290
    %v1292 = vshll.u32 920167782, %v1277
    %v1293 = vshrl.u32 1326507024, %v1278
    %v1294 = vor.u32 %v1292, %v1293
    %vm1295 = vcmp.lt.s32.totalorder %v1276, 1
    %vm1296 = vcmp.lt.s32.totalorder %v1276, 2
    %vm1297 = vcmp.lt.s32.totalorder %v1276, 3
    %vm1298 = vcmp.lt.s32.totalorder %v1276, 4
    %v1299 = vsel %vm1295, %v1279, %v1282
    %v1300 = vsel %vm1298, %v1288, 2102212464
    %v1301 = vsel %vm1297, %v1285, %v1300
    %v1302 = vsel %vm1296, %v1299, %v1301
    %v1303 = vsel %vm1295, %v1282, %v1285
    %v1304 = vsel %vm1298, %v1291, 920167782
    %v1305 = vsel %vm1297, %v1288, %v1304
    %v1306 = vsel %vm1296, %v1303, %v1305
    %v1307 = vsel %vm1295, %v1285, %v1288
    %v1308 = vsel %vm1298, %v1294, 1326507024
    %v1309 = vsel %vm1297, %v1291, %v1308
    %v1310 = vsel %vm1296, %v1307, %v1309
    %v1311 = vshll.u32 %v1271, 8
    %v1312 = vand.u32 %v1311, 65535
    %v1313 = vshrl.u32 %v1311, 16
    %v1314 = vand.u32 %v1310, 65535
    %v1315 = vshrl.u32 %v1310, 16
    %v1316 = vmul.u32 %v1312, %v1314
    %v1317 = vmul.u32 %v1312, %v1315
    %v1318 = vmul.u32 %v1313, %v1314
    %v1319 = vmul.u32 %v1313, %v1315
    %v1320 = vshll.u32 %v1317, 16
    %v1321 = vshrl.u32 %v1317, 16
    %v1322 = vshll.u32 %v1318, 16
    %v1323 = vshrl.u32 %v1318, 16
    %vm1324 = vc.u32 %v1316, %v1320
    %v1325 = vsel %vm1324, 1, 0
    %v1326 = vadd.s32 %v1316, %v1320
    %v1327 = vadd.s32 %v1319, %v1325
    %vm1328 = vc.u32 %v1326, %v1322
    %v1329 = vsel %vm1328, 1, 0
    %v1330 = vadd.s32 %v1326, %v1322
    %v1331 = vadd.s32 %v1327, %v1329
    %v1332 = vadd.s32 %v1331, %v1321
    %v1333 = vadd.s32 %v1332, %v1323
    %v1334 = vand.u32 %v1311, 65535
    %v1335 = vshrl.u32 %v1311, 16
    %v1336 = vand.u32 %v1306, 65535
    %v1337 = vshrl.u32 %v1306, 16
    %v1338 = vmul.u32 %v1334, %v1336
    %v1339 = vmul.u32 %v1334, %v1337
    %v1340 = vmul.u32 %v1335, %v1336
    %v1341 = vmul.u32 %v1335, %v1337
    %v1342 = vshll.u32 %v1339, 16
    %v1343 = vshrl.u32 %v1339, 16
    %v1344 = vshll.u32 %v1340, 16
    %v1345 = vshrl.u32 %v1340, 16
    %vm1346 = vc.u32 %v1338, %v1342
    %v1347 = vsel %vm1346, 1, 0
    %v1348 = vadd.s32 %v1338, %v1342
    %v1349 = vadd.s32 %v1341, %v1347
    %vm1350 = vc.u32 %v1348, %v1344
    %v1351 = vsel %vm1350, 1, 0
    %v1352 = vadd.s32 %v1348, %v1344
    %v1353 = vadd.s32 %v1349, %v1351
    %v1354 = vadd.s32 %v1353, %v1343
    %v1355 = vadd.s32 %v1354, %v1345
    %v1356 = vmul.u32 %v1311, %v1302
    %v1357 = vadd.s32 %v1333, %v1352
    %vm1358 = vc.u32 %v1333, %v1352
    %v1359 = vadd.s32 %v1355, 1
    %v1360 = vsel %vm1358, %v1359, %v1355
    %v1361 = vadd.s32 %v1356, %v1360
    %v1362 = vadd.s32 %v1361, 536870912
    %v1363 = vshrl.u32 %v1362, 30
    %v1364 = vshll.u32 %v1363, 30
    %v1365 = vsub.s32 %v1361, %v1364
    %vm1366 = vcmp.lt.s32.totalorder %v1365, 0
    %v1367 = vsub.s32 0, %v1365
    %v1368 = vsel %vm1366, %v1367, %v1365
    %v1369 = vclz %v1368
    %v1370 = vsub.s32 %v1369, 2
    %vm1371 = vcmp.gt.s32.totalorder 0, %v1370
    %v1372 = vsel %vm1371, 0, %v1370
    %v1373 = vsub.s32 32, %v1372
    %v1374 = vshll.u32 %v1365, %v1372
    %v1375 = vshrl.u32 %v1357, %v1373
    %v1376 = vor.u32 %v1374, %v1375
    %v1377 = vsub.s32 4294967266, %v1372
    %v1378 = vadd.s32 %v1377, 127
    %v1379 = vshll.u32 %v1378, 23
    %v1380 = vor.u32 4788187, %v1379
    %v1381 = vand.u32 2147483647, %v1380
    %v1383 = vcvt.s32.f32 %v1376
    %v1384 = vmul.f32 %v1383, %v1381
    %v1385 = vxor.u32 %v1384, 2147483648
    %v1386 = vsel %vm1265, %v1385, %v1384
    %v1387 = vsub.s32 4, %v1363
    %v1388 = vsel %vm1265, %v1387, %v1363
    %v1389 = vsel %vm1264, %v1262, %v1386
    %v1390 = vsel %vm1264, 0, %v1388
    %v1391 = vmul.f32 %v1389, %v1389
    %v1392 = vmul.f32 %v1391, -0.001358992
    %v1393 = vadd.f32 %v1392, 0.041655596
    %v1394 = vmul.f32 %v1391, %v1393
    %v1395 = vadd.f32 %v1394, -0.4999988
    %v1396 = vmul.f32 %v1391, %v1395
    %v1397 = vadd.f32 1.0, %v1396
    %v1398 = vmul.f32 %v1389, %v1389
    %v1399 = vmul.f32 %v1398, -0.00019511016
    %v1400 = vadd.f32 %v1399, 0.008332121
    %v1401 = vmul.f32 %v1398, %v1400
    %v1402 = vadd.f32 %v1401, -0.16666654
    %v1403 = vmul.f32 %v1398, %v1402
    %v1404 = vadd.f32 %v1403, 1.0
    %v1405 = vmul.f32 %v1404, %v1389
    %vm1406 = vweird.f32 %v1262
    %v1407 = vadd.s32 %v1390, 3
    %v1408 = vand.u32 %v1407, 3
    %vm1409 = vcmp.lt.s32.totalorder %v1408, 2
    %vm1410 = vcmp.eq.s32.totalorder %v1408, 0
    %v1411 = vxor.u32 %v1405, 2147483648
    %v1412 = vsel %vm1410, %v1397, %v1411
    %vm1413 = vcmp.eq.s32.totalorder %v1408, 2
    %v1414 = vxor.u32 %v1397, 2147483648
    %v1415 = vsel %vm1413, %v1414, %v1405
    %v1416 = vsel %vm1409, %v1412, %v1415
    %v1417 = vsel %vm1406, nan, %v1416
    %v1418 = vstv %s1258
    %v1419 = vmul.f32 %v1418, %v1417
    %v1420 = vadd.f32 %v1257, %v1419
    %v1421 = vld [vmem:[#allocation8] sm:$0xff]
    %v1422 = vld [vmem:[%s3] sm:$0x1]
    %1424 = vset.pattern.permute.xlu0 0
    %1425 = vperm.xlu0 %1424, %v1421
    %v1426 = vpop.permute.xlu0 %1425
    %v1428 = vperm.slane %v1422, 0
    %v1429 = vmul.f32 %v1426, %v1428
    %v1430 = vadd.f32 %v1420, %v1429
    %v1431 = vld [vmem:[%s3 + $0x1] sm:$0x1]
    %1432 = vset.pattern.permute.xlu0 1
    %1433 = vperm.xlu0 %1432, %v1421
    %v1434 = vpop.permute.xlu0 %1433
    %v1436 = vperm.slane %v1431, 0
    %v1437 = vmul.f32 %v1434, %v1436
    %v1438 = vadd.f32 %v1430, %v1437
    %v1439 = vld [vmem:[%s3 + $0x2] sm:$0x1]
    %1440 = vset.pattern.permute.xlu0 2
    %1441 = vperm.xlu0 %1440, %v1421
    %v1442 = vpop.permute.xlu0 %1441
    %v1444 = vperm.slane %v1439, 0
    %v1445 = vmul.f32 %v1442, %v1444
    %v1446 = vadd.f32 %v1438, %v1445
    %v1447 = vld [vmem:[%s3 + $0x3] sm:$0x1]
    %1448 = vset.pattern.permute.xlu0 3
    %1449 = vperm.xlu0 %1448, %v1421
    %v1450 = vpop.permute.xlu0 %1449
    %v1452 = vperm.slane %v1447, 0
    %v1453 = vmul.f32 %v1450, %v1452
    %v1454 = vadd.f32 %v1446, %v1453
    %v1455 = vld [vmem:[%s3 + $0x4] sm:$0x1]
    %1456 = vset.pattern.permute.xlu0 4
    %1457 = vperm.xlu0 %1456, %v1421
    %v1458 = vpop.permute.xlu0 %1457
    %v1460 = vperm.slane %v1455, 0
    %v1461 = vmul.f32 %v1458, %v1460
    %v1462 = vadd.f32 %v1454, %v1461
    %v1463 = vld [vmem:[%s3 + $0x5] sm:$0x1]
    %1464 = vset.pattern.permute.xlu0 5
    %1465 = vperm.xlu0 %1464, %v1421
    %v1466 = vpop.permute.xlu0 %1465
    %v1468 = vperm.slane %v1463, 0
    %v1469 = vmul.f32 %v1466, %v1468
    %v1470 = vadd.f32 %v1462, %v1469
    %v1471 = vld [vmem:[%s3 + $0x6] sm:$0x1]
    %1472 = vset.pattern.permute.xlu0 6
    %1473 = vperm.xlu0 %1472, %v1421
    %v1474 = vpop.permute.xlu0 %1473
    %v1476 = vperm.slane %v1471, 0
    %v1477 = vmul.f32 %v1474, %v1476
    %v1478 = vadd.f32 %v1470, %v1477
    %v1479 = vld [vmem:[%s3 + $0x7] sm:$0x1]
    %1480 = vset.pattern.permute.xlu0 7
    %1481 = vperm.xlu0 %1480, %v1421
    %v1482 = vpop.permute.xlu0 %1481
    %v1484 = vperm.slane %v1479, 0
    %v1485 = vmul.f32 %v1482, %v1484
    %v1486 = vadd.f32 %v1478, %v1485
    %v1487 = vld [vmem:[%s3 + $0x8] sm:$0x1]
    %1488 = vset.pattern.permute.xlu0 8
    %1489 = vperm.xlu0 %1488, %v1421
    %v1490 = vpop.permute.xlu0 %1489
    %v1492 = vperm.slane %v1487, 0
    %v1493 = vmul.f32 %v1490, %v1492
    %v1494 = vadd.f32 %v1486, %v1493
    %v1495 = vld [vmem:[%s3 + $0x9] sm:$0x1]
    %1496 = vset.pattern.permute.xlu0 9
    %1497 = vperm.xlu0 %1496, %v1421
    %v1498 = vpop.permute.xlu0 %1497
    %v1500 = vperm.slane %v1495, 0
    %v1501 = vmul.f32 %v1498, %v1500
    %v1502 = vadd.f32 %v1494, %v1501
    %v1503 = vld [vmem:[%s3 + $0xa] sm:$0x1]
    %1504 = vset.pattern.permute.xlu0 10
    %1505 = vperm.xlu0 %1504, %v1421
    %v1506 = vpop.permute.xlu0 %1505
    %v1508 = vperm.slane %v1503, 0
    %v1509 = vmul.f32 %v1506, %v1508
    %v1510 = vadd.f32 %v1502, %v1509
    %v1511 = vld [vmem:[%s3 + $0xb] sm:$0x1]
    %1512 = vset.pattern.permute.xlu0 11
    %1513 = vperm.xlu0 %1512, %v1421
    %v1514 = vpop.permute.xlu0 %1513
    %v1516 = vperm.slane %v1511, 0
    %v1517 = vmul.f32 %v1514, %v1516
    %v1518 = vadd.f32 %v1510, %v1517
    %v1519 = vld [vmem:[%s3 + $0xc] sm:$0x1]
    %1520 = vset.pattern.permute.xlu0 12
    %1521 = vperm.xlu0 %1520, %v1421
    %v1522 = vpop.permute.xlu0 %1521
    %v1524 = vperm.slane %v1519, 0
    %v1525 = vmul.f32 %v1522, %v1524
    %v1526 = vadd.f32 %v1518, %v1525
    %v1527 = vld [vmem:[%s3 + $0xd] sm:$0x1]
    %1528 = vset.pattern.permute.xlu0 13
    %1529 = vperm.xlu0 %1528, %v1421
    %v1530 = vpop.permute.xlu0 %1529
    %v1532 = vperm.slane %v1527, 0
    %v1533 = vmul.f32 %v1530, %v1532
    %v1534 = vadd.f32 %v1526, %v1533
    %v1535 = vld [vmem:[%s3 + $0xe] sm:$0x1]
    %1536 = vset.pattern.permute.xlu0 14
    %1537 = vperm.xlu0 %1536, %v1421
    %v1538 = vpop.permute.xlu0 %1537
    %v1540 = vperm.slane %v1535, 0
    %v1541 = vmul.f32 %v1538, %v1540
    %v1542 = vadd.f32 %v1534, %v1541
    %v1543 = vld [vmem:[%s3 + $0xf] sm:$0x1]
    %1544 = vset.pattern.permute.xlu0 15
    %1545 = vperm.xlu0 %1544, %v1421
    %v1546 = vpop.permute.xlu0 %1545
    %v1548 = vperm.slane %v1543, 0
    %v1549 = vmul.f32 %v1546, %v1548
    %v1550 = vadd.f32 %v1542, %v1549
    %s1551 = sld [smem:[#allocation2]]
    %v1552 = vstv %s1551
    %v1553 = vadd.f32 %v1550, %v1552
    %v1554 = vmax.f32 %v1553, 0.0
    %1555 = vst [vmem:[#allocation12] sm:$0xff] %v1554
    // Predicated region
    $region46: #{tpu_custom_call.1} parent=1 // pred_check
      _
    $region47: #{tpu_custom_call.1} parent=1 // pred_check_branch
      %1557 = sbr.rel (0) target = $region49
    $region48: #{tpu_custom_call.1} parent=1 // pred_region
      %1559 = vsyncadd [#allocation5], 0
      %s1561 = sshll.u32 [#allocation12], 4
      %s1562 = int_to_ptr.vmem [resolvable:$true] %s1561
      %s1563 = sshll.u32 %s7, 4
      %s1564 = int_to_ptr.hbm [resolvable:$true] %s1563
      %1566 = dma.vmem_to_hbm [thread:$0]  %s1562, 128, %s1564, [#allocation5]
    $region49: #{tpu_custom_call.1} parent=1 // pred_fallthru
      _
    // Predicated region
    $region50: #{tpu_custom_call.1} parent=1 // pred_check
      _
    $region51: #{tpu_custom_call.1} parent=1 // pred_check_branch
      %1568 = sbr.rel (0) target = $region53
    $region52: #{tpu_custom_call.1} parent=1 // pred_region
      %1570 = dma.done [#allocation5], 128
    $region53: #{tpu_custom_call.1} parent=1 // pred_fallthru
      _
    %1571 = vsyncpa [#allocation4], 1
    %1572 = vsyncpa [#allocation9], 1
    %1573 = vsyncpa [#allocation5], 1
    %1574 = vsyncpa [#allocation6], 1
    %1575 = vsyncpa [#allocation7], 1

</llo_original>
